<compile_context>
chip_gen: v6e
topology: v6e:2x2x1
jax: 0.10.0
libtpu: 0.0.40
codegen_flags: <defaults>
</compile_context>

<pallas_src>
import math

import jax
import jax.numpy as jnp
from jax.experimental import pallas as pl
from jax.experimental.pallas import tpu as pltpu


def _stage1_kernel(a_ref, x_ref, w1_ref, b1_ref, p_ref, xroot_ref, w2_ref,
                   h1_ref, zw2_ref, acc_ref, z_ref):
    """conv1 aggregation + root_extend#1 + relu + fused z @ W2 (per row tile)."""
    f32 = jnp.float32
    k = pl.program_id(1)

    @pl.when(k == 0)
    def _init():
        acc_ref[...] = jnp.zeros_like(acc_ref)

    # (X_k @ W1) in bf16 -> f32, cast back to bf16 so A_hat @ (.) stays on the
    # bf16 MXU path; accumulate in f32.
    xw1 = jnp.dot(x_ref[...], w1_ref[...],
                  preferred_element_type=f32).astype(jnp.bfloat16)
    acc_ref[...] += jnp.dot(a_ref[...], xw1, preferred_element_type=f32)

    @pl.when(k == pl.num_programs(1) - 1)
    def _finalize():
        hid = acc_ref.shape[1]
        h1 = acc_ref[...] + b1_ref[...]          # conv1 output (pre-relu) == x2
        h1_ref[...] = h1
        # root_extend #1: every node gets its graph root's *input* features.
        re1 = jnp.dot(p_ref[...], xroot_ref[...], preferred_element_type=f32)
        # relu(cat(h1, re1)) written into one contiguous scratch (single fused
        # conv2 "lin" matmul below).  Dropout is identity (eval mode).
        # TODO(synk): F.dropout(training=True) not reproduced; inference only.
        z_ref[:, :hid] = jnp.maximum(h1, 0.0)
        z_ref[:, hid:] = jnp.maximum(re1, 0.0)
        zw2_ref[...] = jnp.dot(z_ref[...].astype(jnp.bfloat16), w2_ref[...],
                               preferred_element_type=f32).astype(zw2_ref.dtype)


def _stage2_kernel(a_ref, zw2_ref, b2_ref, p_ref, h1root_ref, out_ref, acc_ref):
    """conv2 aggregation + relu + root_extend#2 + per-tile segment-sum pooling."""
    f32 = jnp.float32
    k = pl.program_id(1)

    @pl.when(k == 0)
    def _init():
        acc_ref[...] = jnp.zeros_like(acc_ref)

    acc_ref[...] += jnp.dot(a_ref[...], zw2_ref[...], preferred_element_type=f32)

    @pl.when(k == pl.num_programs(1) - 1)
    def _finalize():
        out_f = acc_ref.shape[1]
        h2 = jnp.maximum(acc_ref[...] + b2_ref[...], 0.0)          # [TM, O]
        p = p_ref[...]                                             # [TM, B] 0/1
        # root_extend #2: roots' conv1 (pre-relu) output.
        re2 = jnp.dot(p, h1root_ref[...], preferred_element_type=f32)  # [TM, H]
        # segment-sum of cat(h2, re2) over this row tile (contract node axis);
        # written directly into lane slices of the output block.
        cdims = (((0,), (0,)), ((), ()))
        out_ref[0, :, :out_f] = jax.lax.dot_general(
            p, h2, cdims, preferred_element_type=f32)
        out_ref[0, :, out_f:] = jax.lax.dot_general(
            p, re2, cdims, preferred_element_type=f32)


def _round_up(n, m):
    return (n + m - 1) // m * m


def tdrumor_gcn_forward(x, edge_index, batch, root_index, params,
                        *, tile_m=128, tile_k=128,
                        vmem_limit_bytes=32 * 1024 * 1024):
    """x:[N,Fin] f32, edge_index:[2,E] i32 (src,dst), batch:[N] i32, root_index:[B] i32."""
    f32, bf16 = jnp.float32, jnp.bfloat16
    x = jnp.asarray(x, f32)
    N, in_f = x.shape
    B = int(root_index.shape[0])
    W1 = jnp.asarray(params["W1"], f32)
    b1 = jnp.asarray(params["b1"], f32)
    W2 = jnp.asarray(params["W2"], f32)
    b2 = jnp.asarray(params["b2"], f32)
    hid = W1.shape[1]
    out_f = W2.shape[1]
    feat_w = out_f + hid

    # Pad node dim so both grid axes tile exactly.  Padded nodes get only a
    # self-loop, an out-of-range batch id and zero features: they feed no real
    # node and contribute nothing to the pooled means.
    n_pad = _round_up(N, math.lcm(tile_m, tile_k))

    # ---- graph operators: O(E) + O(N*B) glue, no dense gather/pool matrices ----
    # TODO(synk): dense normalized adjacency is still materialized here; large
    # sparse graphs need a CSR/edge-list gather-accumulate propagation kernel
    # (or A_hat precomputed once and reused across forward passes).
    src, dst = edge_index[0], edge_index[1]
    adj = jnp.zeros((n_pad, n_pad), f32).at[dst, src].add(1.0)
    adj = adj + jnp.eye(n_pad, dtype=f32)
    dinv = jax.lax.rsqrt(jnp.sum(adj, axis=1))
    a_hat = (adj * dinv[:, None] * dinv[None, :]).astype(bf16)

    batch_p = jnp.concatenate(
        [batch.astype(jnp.int32), jnp.full((n_pad - N,), B, jnp.int32)])
    p_mat = jax.nn.one_hot(batch_p, B, dtype=f32)      # [n_pad, B]; pad rows = 0
    counts = jnp.zeros((B,), f32).at[batch].add(1.0)   # nodes per graph
    x_roots = x[root_index]                            # [B, Fin]
    x_p = jnp.zeros((n_pad, in_f), bf16).at[:N].set(x.astype(bf16))

    grid = (n_pad // tile_m, n_pad // tile_k)
    n_row_tiles = grid[0]
    cparams = pltpu.CompilerParams(
        dimension_semantics=("parallel", "arbitrary"),
        vmem_limit_bytes=vmem_limit_bytes)

    # -------- stage 1: conv1 + root_extend#1 + relu + fused z @ W2 --------
    cost1 = pl.CostEstimate(
        flops=(2 * n_pad * n_pad * hid
               + 2 * n_pad * in_f * hid * n_row_tiles
               + 2 * n_pad * (hid + in_f) * out_f
               + 2 * n_pad * B * in_f),
        transcendentals=0,
        bytes_accessed=(2 * n_pad * n_pad + 2 * n_pad * in_f * n_row_tiles
                        + 4 * n_pad * hid + 2 * n_pad * out_f))
    h1, zw2 = pl.pallas_call(
        _stage1_kernel,
        out_shape=[jax.ShapeDtypeStruct((n_pad, hid), f32),
                   jax.ShapeDtypeStruct((n_pad, out_f), bf16)],
        grid_spec=pltpu.PrefetchScalarGridSpec(
            num_scalar_prefetch=0,
            grid=grid,
            in_specs=[
                pl.BlockSpec((tile_m, tile_k), lambda i, k: (i, k)),    # A_hat
                pl.BlockSpec((tile_k, in_f), lambda i, k: (k, 0)),      # X
                pl.BlockSpec((in_f, hid), lambda i, k: (0, 0)),         # W1
                pl.BlockSpec((1, hid), lambda i, k: (0, 0)),            # b1
                pl.BlockSpec((tile_m, B), lambda i, k: (i, 0)),         # one_hot(batch)
                pl.BlockSpec((B, in_f), lambda i, k: (0, 0)),           # X[roots]
                pl.BlockSpec((hid + in_f, out_f), lambda i, k: (0, 0)), # W2
            ],
            out_specs=[
                pl.BlockSpec((tile_m, hid), lambda i, k: (i, 0)),       # h1 (pre-relu)
                pl.BlockSpec((tile_m, out_f), lambda i, k: (i, 0)),     # z @ W2
            ],
            scratch_shapes=[pltpu.VMEM((tile_m, hid), f32),
                            pltpu.VMEM((tile_m, hid + in_f), f32)],
        ),
        compiler_params=cparams,
        cost_estimate=cost1,
    )(a_hat, x_p, W1.astype(bf16), b1.reshape(1, hid), p_mat,
      x_roots, W2.astype(bf16))

    # tiny [B]-row gather between the two stages (glue).
    h1_roots = h1[root_index]                                          # [B, H]

    # -------- stage 2: conv2 aggregation + relu + root_extend#2 + pooling --------
    cost2 = pl.CostEstimate(
        flops=2 * n_pad * n_pad * out_f + 2 * n_pad * B * (hid + feat_w),
        transcendentals=0,
        bytes_accessed=(2 * n_pad * n_pad + 2 * n_pad * out_f * n_row_tiles
                        + 4 * n_row_tiles * B * feat_w))
    partial = pl.pallas_call(
        _stage2_kernel,
        out_shape=jax.ShapeDtypeStruct((n_row_tiles, B, feat_w), f32),
        grid_spec=pltpu.PrefetchScalarGridSpec(
            num_scalar_prefetch=0,
            grid=grid,
            in_specs=[
                pl.BlockSpec((tile_m, tile_k), lambda i, k: (i, k)),    # A_hat
                pl.BlockSpec((tile_k, out_f), lambda i, k: (k, 0)),     # z @ W2
                pl.BlockSpec((1, out_f), lambda i, k: (0, 0)),          # b2
                pl.BlockSpec((tile_m, B), lambda i, k: (i, 0)),         # one_hot(batch)
                pl.BlockSpec((B, hid), lambda i, k: (0, 0)),            # h1[roots]
            ],
            out_specs=pl.BlockSpec((1, B, feat_w), lambda i, k: (i, 0, 0)),
            scratch_shapes=[pltpu.VMEM((tile_m, out_f), f32)],
        ),
        compiler_params=cparams,
        cost_estimate=cost2,
    )(a_hat, zw2, b2.reshape(1, out_f), p_mat, h1_roots)

    # scatter_mean: reduce per-row-tile partial sums (kept per-tile so the row
    # axis stays "parallel" for megacore), then divide by graph sizes.
    pooled = jnp.sum(partial, axis=0) / jnp.maximum(counts, 1.0)[:, None]
    return pooled


def _reference(x, edge_index, batch, root_index, params):
    """Pure-f32 JAX reference matching the PyTorch forward (eval mode)."""
    x = x.astype(jnp.float32)
    N = x.shape[0]
    B = root_index.shape[0]
    A = jnp.zeros((N, N), jnp.float32).at[edge_index[1], edge_index[0]].add(1.0)
    A = A + jnp.eye(N, dtype=jnp.float32)
    d = jax.lax.rsqrt(jnp.sum(A, axis=1))
    Ah = A * d[:, None] * d[None, :]
    h1 = Ah @ (x @ params["W1"]) + params["b1"]
    re1 = x[root_index[batch]]
    z = jax.nn.relu(jnp.concatenate([h1, re1], axis=1))
    h2 = jax.nn.relu(Ah @ (z @ params["W2"]) + params["b2"])
    re2 = h1[root_index[batch]]
    feat = jnp.concatenate([h2, re2], axis=1)
    pool = jnp.transpose(jax.nn.one_hot(batch, B, dtype=jnp.float32))
    return (pool @ feat) / jnp.sum(pool, axis=1, keepdims=True)


if __name__ == "__main__":
    key = jax.random.PRNGKey(0)
    in_f, hid, out_f = 8, 32, 16
    graph_sizes = (100, 100)    # 2 rooted trees -> N=200 (pads to 256 = 2x2 tiles)

    src_l, dst_l, batch_l, roots = [], [], [], []
    off = 0
    for g, sz in enumerate(graph_sizes):
        roots.append(off)
        for j in range(1, sz):
            src_l.append(off + (j - 1) // 2)   # parent -> child (top-down edges)
            dst_l.append(off + j)
        batch_l += [g] * sz
        off += sz
    N = off
    B = len(graph_sizes)
    edge_index = jnp.array([src_l, dst_l], dtype=jnp.int32)
    batch = jnp.array(batch_l, dtype=jnp.int32)
    root_index = jnp.array(roots, dtype=jnp.int32)

    k1, k2, k3 = jax.random.split(key, 3)
    x = jax.random.normal(k1, (N, in_f), dtype=jnp.float32)
    params = dict(
        W1=jax.random.normal(k2, (in_f, hid), jnp.float32)
           * (2.0 / (in_f + hid)) ** 0.5,
        b1=jnp.full((hid,), 0.05, jnp.float32),
        W2=jax.random.normal(k3, (hid + in_f, out_f), jnp.float32)
           * (2.0 / (hid + in_f + out_f)) ** 0.5,
        b2=jnp.full((out_f,), -0.05, jnp.float32),
    )

    out = jax.block_until_ready(
        tdrumor_gcn_forward(x, edge_index, batch, root_index, params))
    ref = jax.block_until_ready(_reference(x, edge_index, batch, root_index, params))

    assert out.shape == (B, out_f + hid), out.shape
    err = float(jnp.max(jnp.abs(out - ref)))
    # bf16 MXU inputs with f32 accumulation -> compare at bf16-level tolerance.
    assert jnp.allclose(out, ref, atol=2e-2, rtol=2e-2), \
        f"mismatch vs reference: max abs err {err}"
    print("KERNEL_OK")
</pallas_src>

<mosaic_0001>
module attributes {stable_mosaic.version = 11 : i64} {
  func.func @_stage1_kernel(%arg0: i32, %arg1: i32, %arg2: memref<128x128xbf16, #tpu.memory_space<vmem>>, %arg3: memref<128x8xbf16, #tpu.memory_space<vmem>>, %arg4: memref<8x32xbf16, #tpu.memory_space<vmem>>, %arg5: memref<1x32xf32, #tpu.memory_space<vmem>>, %arg6: memref<128x2xf32, #tpu.memory_space<vmem>>, %arg7: memref<2x8xf32, #tpu.memory_space<vmem>>, %arg8: memref<40x16xbf16, #tpu.memory_space<vmem>>, %arg9: memref<128x32xf32, #tpu.memory_space<vmem>>, %arg10: memref<128x16xbf16, #tpu.memory_space<vmem>>, %arg11: memref<128x32xf32, #tpu.memory_space<vmem>>, %arg12: memref<128x40xf32, #tpu.memory_space<vmem>>) attributes {dimension_semantics = [#tpu.dimension_semantics<parallel>, #tpu.dimension_semantics<arbitrary>], iteration_bounds = array<i64: 2, 2>, scalar_prefetch = 0 : i64, scratch_operands = 2 : i64, tpu.core_type = #tpu.core_type<tc>, window_params = [{transform_indices = @transform_0, window_bounds = array<i64: 128, 128>}, {transform_indices = @transform_1, window_bounds = array<i64: 128, 8>}, {pipeline_mode = #tpu.pipeline_mode<synchronous>, transform_indices = @transform_2, window_bounds = array<i64: 8, 32>}, {pipeline_mode = #tpu.pipeline_mode<synchronous>, transform_indices = @transform_3, window_bounds = array<i64: 1, 32>}, {transform_indices = @transform_4, window_bounds = array<i64: 128, 2>}, {pipeline_mode = #tpu.pipeline_mode<synchronous>, transform_indices = @transform_5, window_bounds = array<i64: 2, 8>}, {pipeline_mode = #tpu.pipeline_mode<synchronous>, transform_indices = @transform_6, window_bounds = array<i64: 40, 16>}, {transform_indices = @transform_7, window_bounds = array<i64: 128, 32>}, {transform_indices = @transform_8, window_bounds = array<i64: 128, 16>}]} {
    %c0_i32 = arith.constant 0 : i32
    %0 = arith.cmpi eq, %arg1, %c0_i32 : i32
    %1 = arith.extui %0 : i1 to i32
    %c0_i32_0 = arith.constant 0 : i32
    %2 = arith.cmpi ne, %1, %c0_i32_0 : i32
    scf.if %2 {
      %cst_12 = arith.constant 0.000000e+00 : f32
      %15 = vector.broadcast %cst_12 : f32 to vector<128x32xf32>
      %c0_13 = arith.constant 0 : index
      %c0_14 = arith.constant 0 : index
      %16 = vector.load %arg11[%c0_13, %c0_14] : memref<128x32xf32, #tpu.memory_space<vmem>>, vector<128x32xf32>
      tpu.vector_store %arg11[%c0_13, %c0_14], %15 {strides = array<i32>} : memref<128x32xf32, #tpu.memory_space<vmem>>, vector<128x32xf32>,
    } else {
    }
    %c0 = arith.constant 0 : index
    %c0_1 = arith.constant 0 : index
    %3 = vector.load %arg3[%c0, %c0_1] : memref<128x8xbf16, #tpu.memory_space<vmem>>, vector<128x8xbf16>
    %c0_2 = arith.constant 0 : index
    %c0_3 = arith.constant 0 : index
    %4 = vector.load %arg4[%c0_2, %c0_3] : memref<8x32xbf16, #tpu.memory_space<vmem>>, vector<8x32xbf16>
    %cst = arith.constant dense<0.000000e+00> : vector<128x32xf32>
    %5 = tpu.matmul %3, %4, %cst {dimension_numbers = #tpu.dot_dimension_numbers<[1], [0], [0], [1], [0, 0, 1, 1], [], []>} : vector<128x8xbf16>, vector<8x32xbf16>, vector<128x32xf32> -> vector<128x32xf32>
    %6 = arith.truncf %5 : vector<128x32xf32> to vector<128x32xbf16>
    %c0_4 = arith.constant 0 : index
    %c0_5 = arith.constant 0 : index
    %7 = vector.load %arg11[%c0_4, %c0_5] : memref<128x32xf32, #tpu.memory_space<vmem>>, vector<128x32xf32>
    %c0_6 = arith.constant 0 : index
    %c0_7 = arith.constant 0 : index
    %8 = vector.load %arg2[%c0_6, %c0_7] : memref<128x128xbf16, #tpu.memory_space<vmem>>, vector<128x128xbf16>
    %cst_8 = arith.constant dense<0.000000e+00> : vector<128x32xf32>
    %9 = tpu.matmul %8, %6, %cst_8 {dimension_numbers = #tpu.dot_dimension_numbers<[1], [0], [0], [1], [0, 0, 1, 1], [], []>} : vector<128x128xbf16>, vector<128x32xbf16>, vector<128x32xf32> -> vector<128x32xf32>
    %10 = arith.addf %7, %9 : vector<128x32xf32>
    %c0_9 = arith.constant 0 : index
    %c0_10 = arith.constant 0 : index
    %11 = vector.load %arg11[%c0_9, %c0_10] : memref<128x32xf32, #tpu.memory_space<vmem>>, vector<128x32xf32>
    tpu.vector_store %arg11[%c0_9, %c0_10], %10 {strides = array<i32>} : memref<128x32xf32, #tpu.memory_space<vmem>>, vector<128x32xf32>,
    %c1_i32 = arith.constant 1 : i32
    %12 = arith.cmpi eq, %arg1, %c1_i32 : i32
    %13 = arith.extui %12 : i1 to i32
    %c0_i32_11 = arith.constant 0 : i32
    %14 = arith.cmpi ne, %13, %c0_i32_11 : i32
    scf.if %14 {
      %c0_12 = arith.constant 0 : index
      %c0_13 = arith.constant 0 : index
      %15 = vector.load %arg11[%c0_12, %c0_13] : memref<128x32xf32, #tpu.memory_space<vmem>>, vector<128x32xf32>
      %c0_14 = arith.constant 0 : index
      %c0_15 = arith.constant 0 : index
      %16 = vector.load %arg5[%c0_14, %c0_15] : memref<1x32xf32, #tpu.memory_space<vmem>>, vector<1x32xf32>
      %17 = vector.broadcast %16 : vector<1x32xf32> to vector<128x32xf32>
      %18 = arith.addf %15, %17 : vector<128x32xf32>
      %c0_16 = arith.constant 0 : index
      %c0_17 = arith.constant 0 : index
      %19 = vector.load %arg9[%c0_16, %c0_17] : memref<128x32xf32, #tpu.memory_space<vmem>>, vector<128x32xf32>
      tpu.vector_store %arg9[%c0_16, %c0_17], %18 {strides = array<i32>} : memref<128x32xf32, #tpu.memory_space<vmem>>, vector<128x32xf32>,
      %c0_18 = arith.constant 0 : index
      %c0_19 = arith.constant 0 : index
      %20 = vector.load %arg6[%c0_18, %c0_19] : memref<128x2xf32, #tpu.memory_space<vmem>>, vector<128x2xf32>
      %c0_20 = arith.constant 0 : index
      %c0_21 = arith.constant 0 : index
      %21 = vector.load %arg7[%c0_20, %c0_21] : memref<2x8xf32, #tpu.memory_space<vmem>>, vector<2x8xf32>
      %cst_22 = arith.constant dense<0.000000e+00> : vector<128x8xf32>
      %22 = tpu.matmul %20, %21, %cst_22 {dimension_numbers = #tpu.dot_dimension_numbers<[1], [0], [0], [1], [0, 0, 1, 1], [], []>} : vector<128x2xf32>, vector<2x8xf32>, vector<128x8xf32> -> vector<128x8xf32>
      %cst_23 = arith.constant 0.000000e+00 : f32
      %23 = vector.broadcast %cst_23 : f32 to vector<128x32xf32>
      %24 = arith.maximumf %18, %23 : vector<128x32xf32>
      %c0_24 = arith.constant 0 : index
      %c0_25 = arith.constant 0 : index
      %25 = vector.load %arg12[%c0_24, %c0_25] : memref<128x40xf32, #tpu.memory_space<vmem>>, vector<128x32xf32>
      tpu.vector_store %arg12[%c0_24, %c0_25], %24 {strides = array<i32>} : memref<128x40xf32, #tpu.memory_space<vmem>>, vector<128x32xf32>,
      %cst_26 = arith.constant 0.000000e+00 : f32
      %26 = vector.broadcast %cst_26 : f32 to vector<128x8xf32>
      %27 = arith.maximumf %22, %26 : vector<128x8xf32>
      %c0_27 = arith.constant 0 : index
      %c32 = arith.constant 32 : index
      %28 = vector.load %arg12[%c0_27, %c32] : memref<128x40xf32, #tpu.memory_space<vmem>>, vector<128x8xf32>
      tpu.vector_store %arg12[%c0_27, %c32], %27 {strides = array<i32>} : memref<128x40xf32, #tpu.memory_space<vmem>>, vector<128x8xf32>,
      %c0_28 = arith.constant 0 : index
      %c0_29 = arith.constant 0 : index
      %29 = vector.load %arg12[%c0_28, %c0_29] : memref<128x40xf32, #tpu.memory_space<vmem>>, vector<128x40xf32>
      %30 = arith.truncf %29 : vector<128x40xf32> to vector<128x40xbf16>
      %c0_30 = arith.constant 0 : index
      %c0_31 = arith.constant 0 : index
      %31 = vector.load %arg8[%c0_30, %c0_31] : memref<40x16xbf16, #tpu.memory_space<vmem>>, vector<40x16xbf16>
      %cst_32 = arith.constant dense<0.000000e+00> : vector<128x16xf32>
      %32 = tpu.matmul %30, %31, %cst_32 {dimension_numbers = #tpu.dot_dimension_numbers<[1], [0], [0], [1], [0, 0, 1, 1], [], []>} : vector<128x40xbf16>, vector<40x16xbf16>, vector<128x16xf32> -> vector<128x16xf32>
      %33 = arith.truncf %32 : vector<128x16xf32> to vector<128x16xbf16>
      %c0_33 = arith.constant 0 : index
      %c0_34 = arith.constant 0 : index
      %34 = vector.load %arg10[%c0_33, %c0_34] : memref<128x16xbf16, #tpu.memory_space<vmem>>, vector<128x16xbf16>
      tpu.vector_store %arg10[%c0_33, %c0_34], %33 {strides = array<i32>} : memref<128x16xbf16, #tpu.memory_space<vmem>>, vector<128x16xbf16>,
    } else {
    }
    return
  }
  func.func @transform_0(%arg0: i32, %arg1: i32) -> (i32, i32) {
    %c0_i32 = arith.constant 0 : i32
    return %arg0, %arg1 : i32, i32
  }
  func.func @transform_1(%arg0: i32, %arg1: i32) -> (i32, i32) {
    %c0_i32 = arith.constant 0 : i32
    %c0_i32_0 = arith.constant 0 : i32
    return %arg1, %c0_i32 : i32, i32
  }
  func.func @transform_2(%arg0: i32, %arg1: i32) -> (i32, i32) {
    %c0_i32 = arith.constant 0 : i32
    %c0_i32_0 = arith.constant 0 : i32
    %c0_i32_1 = arith.constant 0 : i32
    return %c0_i32, %c0_i32_0 : i32, i32
  }
  func.func @transform_3(%arg0: i32, %arg1: i32) -> (i32, i32) {
    %c0_i32 = arith.constant 0 : i32
    %c0_i32_0 = arith.constant 0 : i32
    %c0_i32_1 = arith.constant 0 : i32
    return %c0_i32, %c0_i32_0 : i32, i32
  }
  func.func @transform_4(%arg0: i32, %arg1: i32) -> (i32, i32) {
    %c0_i32 = arith.constant 0 : i32
    %c0_i32_0 = arith.constant 0 : i32
    return %arg0, %c0_i32 : i32, i32
  }
  func.func @transform_5(%arg0: i32, %arg1: i32) -> (i32, i32) {
    %c0_i32 = arith.constant 0 : i32
    %c0_i32_0 = arith.constant 0 : i32
    %c0_i32_1 = arith.constant 0 : i32
    return %c0_i32, %c0_i32_0 : i32, i32
  }
  func.func @transform_6(%arg0: i32, %arg1: i32) -> (i32, i32) {
    %c0_i32 = arith.constant 0 : i32
    %c0_i32_0 = arith.constant 0 : i32
    %c0_i32_1 = arith.constant 0 : i32
    return %c0_i32, %c0_i32_0 : i32, i32
  }
  func.func @transform_7(%arg0: i32, %arg1: i32) -> (i32, i32) {
    %c0_i32 = arith.constant 0 : i32
    %c0_i32_0 = arith.constant 0 : i32
    return %arg0, %c0_i32 : i32, i32
  }
  func.func @transform_8(%arg0: i32, %arg1: i32) -> (i32, i32) {
    %c0_i32 = arith.constant 0 : i32
    %c0_i32_0 = arith.constant 0 : i32
    return %arg0, %c0_i32 : i32, i32
  }
}

</mosaic_0001>

<llo_original>
// kernel: tpu_custom_call.1
$region0: #{tpu_custom_call.1}
  #allocation0 [shape = 'u32[]', space=smem, size = 0x4, offset = 0x4, fixed_abs, tag = 'smem constant byte address 0x4 - core index']
  #allocation1 [shape = 'u32[144,128]{1,0:T(1,128)}', space=vmem, size = 0x12000, scoped, tag = 'internal scratch']
  #allocation2 [shape = 'f32[128,32]{1,0:T(8,128)}', space=vmem, size = 0x10000, scoped, tag = 'scratch operand']
  #allocation3 [shape = 'f32[128,40]{1,0:T(8,128)}', space=vmem, size = 0x10000, scoped, tag = 'scratch operand']
  %s0 = inlined_call_operand.vmem [shape: bf16[256,256], index: 0, kind: input, shape index: {}]
  %s1 = inlined_call_operand.vmem [shape: bf16[256,8], index: 1, kind: input, shape index: {}]
  %s2 = inlined_call_operand.vmem [shape: bf16[8,32], index: 2, kind: input, shape index: {}]
  %s3 = inlined_call_operand.vmem [shape: f32[1,32], index: 3, kind: input, shape index: {}]
  %s4 = inlined_call_operand.vmem [shape: f32[256,2], index: 4, kind: input, shape index: {}]
  %s5 = inlined_call_operand.vmem [shape: f32[2,8], index: 5, kind: input, shape index: {}]
  %s6 = inlined_call_operand.vmem [shape: bf16[40,16], index: 6, kind: input, shape index: {}]
  %s7 = inlined_call_operand.vmem [shape: f32[256,32], index: 7, kind: output, shape index: {0}]
  %s8 = inlined_call_operand.vmem [shape: bf16[256,16], index: 8, kind: output, shape index: {1}]
  %9 = xla_tuple %s7, %s8
  %s10 = sld [smem:[#allocation0]]
  $region118: #{tpu_custom_call.1} parent=0
    _
  %s12 = ssub.s32 1, %s10
  %s13 = scalar_select 0, %s12, %s10
  $region1: #{tpu_custom_call.1} parent=0
    #allocation4 [shape = 'u8[65536]{0}', space=vmem, size = 0x10000, scoped, tag = 'input window, operand 0']
    loop: start=0, step=1, limit=6
    $region2: #{tpu_custom_call.1} parent=1 // loop_pre_header
      _
    $region3: #{tpu_custom_call.1} parent=1 // loop_header
      %s15 = sphi 0, %s19
      %p16 = scmp.ge.s32.totalorder %s15, 6
      %s22 = sphi 0, %s34
      %s23 = sphi 0, %s30
      %s24 = sphi 0, %s22
      %s25 = sphi 0, %s23
      %s26 = sphi 0, %s24
      %s27 = sphi 0, %s25
      %s39 = sphi 0, %s41
      %s42 = sphi 0, %s39
      %s43 = sphi 0, %s42
      %s59 = sphi 0, %s43
      %s65 = sphi 0, %s67
      %s68 = sphi 0, %s65
      %s69 = sphi 0, %s68
      %s85 = sphi 0, %s69
      %s89 = sphi 0, %s89
      %s91 = sphi 0, %s89
      %s92 = sphi 0, %s91
      %s106 = sphi 0, %s92
      %s110 = sphi 0, %s110
      %s112 = sphi 0, %s110
      %s113 = sphi 0, %s112
      %s127 = sphi 0, %s113
      %s133 = sphi 0, %s135
      %s136 = sphi 0, %s133
      %s137 = sphi 0, %s136
      %s153 = sphi 0, %s137
      %s157 = sphi 0, %s157
      %s159 = sphi 0, %s157
      %s160 = sphi 0, %s159
      %s174 = sphi 0, %s160
      %s178 = sphi 0, %s178
      %s180 = sphi 0, %s178
      %s181 = sphi 0, %s180
      %s195 = sphi 0, %s181
      %s201 = sphi 0, %s203
      %s204 = sphi 0, %s201
      %s205 = sphi 0, %s204
      %s221 = sphi 0, %s205
      %s227 = sphi 0, %s229
      %s230 = sphi 0, %s227
      %s231 = sphi 0, %s230
      %s247 = sphi 0, %s231
    $region4: #{tpu_custom_call.1} parent=1 // loop_header_branch
      %18 = sbr.rel (%p16) target = $region8
    $region5: #{tpu_custom_call.1} parent=1 // loop_body
      %s20 = ssub.s32 %s15, 1
      %s21 = ssub.s32 %s15, 2
      %s28 = sadd.s32 1, %s23
      %p29 = scmp.ge.s32.totalorder %s28, 2
      %s30 = scalar_select %p29, 0, %s28
      %s31 = sadd.s32 1, %s22
      %s32 = scalar_select %p29, %s31, %s22
      %p33 = scmp.ge.s32.totalorder %s32, 2
      %s34 = scalar_select %p33, 0, %s32
      %s35 = ssub.s32 %s22, %s34
      %s36 = ssub.s32 %s23, %s30
      %s37 = sor.u32 %s35, %s36
      %p38 = scmp.eq.s32.totalorder %s37, 0
      %s40 = sadd.s32 %s39, 1
      %s41 = scalar_select %p38, %s39, %s40
      %p44 = pneg %p38
      %p45 = scmp.eq.s32.totalorder %s15, 3
      %p46 = por %p44, %p45
      %p47 = scmp.ne.s32.totalorder %s39, %s42
      %p48 = scmp.eq.s32.totalorder %s15, 0
      %p49 = por %p47, %p48
      %p50 = scmp.ne.s32.totalorder %s39, %s42
      %p51 = scmp.eq.s32.totalorder %s20, 3
      %p52 = por %p50, %p51
      %p53 = scmp.ne.s32.totalorder %s42, %s43
      %p54 = scmp.eq.s32.totalorder %s20, 0
      %p55 = por %p53, %p54
      %p56 = scmp.ne.s32.totalorder %s42, %s43
      %p57 = scmp.eq.s32.totalorder %s21, 3
      %p58 = por %p56, %p57
      %p60 = scmp.ne.s32.totalorder %s43, %s59
      %p61 = scmp.eq.s32.totalorder %s21, 0
      %p62 = por %p60, %p61
      %s63 = ssub.s32 %s23, %s30
      %p64 = scmp.eq.s32.totalorder %s63, 0
      %s66 = sadd.s32 %s65, 1
      %s67 = scalar_select %p64, %s65, %s66
      %p70 = pneg %p64
      %p71 = scmp.eq.s32.totalorder %s15, 3
      %p72 = por %p70, %p71
      %p73 = scmp.ne.s32.totalorder %s65, %s68
      %p74 = scmp.eq.s32.totalorder %s15, 0
      %p75 = por %p73, %p74
      %p76 = scmp.ne.s32.totalorder %s65, %s68
      %p77 = scmp.eq.s32.totalorder %s20, 3
      %p78 = por %p76, %p77
      %p79 = scmp.ne.s32.totalorder %s68, %s69
      %p80 = scmp.eq.s32.totalorder %s20, 0
      %p81 = por %p79, %p80
      %p82 = scmp.ne.s32.totalorder %s68, %s69
      %p83 = scmp.eq.s32.totalorder %s21, 3
      %p84 = por %p82, %p83
      %p86 = scmp.ne.s32.totalorder %s69, %s85
      %p87 = scmp.eq.s32.totalorder %s21, 0
      %p88 = por %p86, %p87
      %s90 = sadd.s32 %s89, 1
      %p93 = scmp.eq.s32.totalorder %s15, 3
      %p94 = scmp.ne.s32.totalorder %s89, %s91
      %p95 = scmp.eq.s32.totalorder %s15, 0
      %p96 = por %p94, %p95
      %p97 = scmp.ne.s32.totalorder %s89, %s91
      %p98 = scmp.eq.s32.totalorder %s20, 3
      %p99 = por %p97, %p98
      %p100 = scmp.ne.s32.totalorder %s91, %s92
      %p101 = scmp.eq.s32.totalorder %s20, 0
      %p102 = por %p100, %p101
      %p103 = scmp.ne.s32.totalorder %s91, %s92
      %p104 = scmp.eq.s32.totalorder %s21, 3
      %p105 = por %p103, %p104
      %p107 = scmp.ne.s32.totalorder %s92, %s106
      %p108 = scmp.eq.s32.totalorder %s21, 0
      %p109 = por %p107, %p108
      %s111 = sadd.s32 %s110, 1
      %p114 = scmp.eq.s32.totalorder %s15, 3
      %p115 = scmp.ne.s32.totalorder %s110, %s112
      %p116 = scmp.eq.s32.totalorder %s15, 0
      %p117 = por %p115, %p116
      %p118 = scmp.ne.s32.totalorder %s110, %s112
      %p119 = scmp.eq.s32.totalorder %s20, 3
      %p120 = por %p118, %p119
      %p121 = scmp.ne.s32.totalorder %s112, %s113
      %p122 = scmp.eq.s32.totalorder %s20, 0
      %p123 = por %p121, %p122
      %p124 = scmp.ne.s32.totalorder %s112, %s113
      %p125 = scmp.eq.s32.totalorder %s21, 3
      %p126 = por %p124, %p125
      %p128 = scmp.ne.s32.totalorder %s113, %s127
      %p129 = scmp.eq.s32.totalorder %s21, 0
      %p130 = por %p128, %p129
      %s131 = ssub.s32 %s22, %s34
      %p132 = scmp.eq.s32.totalorder %s131, 0
      %s134 = sadd.s32 %s133, 1
      %s135 = scalar_select %p132, %s133, %s134
      %p138 = pneg %p132
      %p139 = scmp.eq.s32.totalorder %s15, 3
      %p140 = por %p138, %p139
      %p141 = scmp.ne.s32.totalorder %s133, %s136
      %p142 = scmp.eq.s32.totalorder %s15, 0
      %p143 = por %p141, %p142
      %p144 = scmp.ne.s32.totalorder %s133, %s136
      %p145 = scmp.eq.s32.totalorder %s20, 3
      %p146 = por %p144, %p145
      %p147 = scmp.ne.s32.totalorder %s136, %s137
      %p148 = scmp.eq.s32.totalorder %s20, 0
      %p149 = por %p147, %p148
      %p150 = scmp.ne.s32.totalorder %s136, %s137
      %p151 = scmp.eq.s32.totalorder %s21, 3
      %p152 = por %p150, %p151
      %p154 = scmp.ne.s32.totalorder %s137, %s153
      %p155 = scmp.eq.s32.totalorder %s21, 0
      %p156 = por %p154, %p155
      %s158 = sadd.s32 %s157, 1
      %p161 = scmp.eq.s32.totalorder %s15, 3
      %p162 = scmp.ne.s32.totalorder %s157, %s159
      %p163 = scmp.eq.s32.totalorder %s15, 0
      %p164 = por %p162, %p163
      %p165 = scmp.ne.s32.totalorder %s157, %s159
      %p166 = scmp.eq.s32.totalorder %s20, 3
      %p167 = por %p165, %p166
      %p168 = scmp.ne.s32.totalorder %s159, %s160
      %p169 = scmp.eq.s32.totalorder %s20, 0
      %p170 = por %p168, %p169
      %p171 = scmp.ne.s32.totalorder %s159, %s160
      %p172 = scmp.eq.s32.totalorder %s21, 3
      %p173 = por %p171, %p172
      %p175 = scmp.ne.s32.totalorder %s160, %s174
      %p176 = scmp.eq.s32.totalorder %s21, 0
      %p177 = por %p175, %p176
      %s179 = sadd.s32 %s178, 1
      %p182 = scmp.eq.s32.totalorder %s15, 3
      %p183 = scmp.ne.s32.totalorder %s178, %s180
      %p184 = scmp.eq.s32.totalorder %s15, 0
      %p185 = por %p183, %p184
      %p186 = scmp.ne.s32.totalorder %s178, %s180
      %p187 = scmp.eq.s32.totalorder %s20, 3
      %p188 = por %p186, %p187
      %p189 = scmp.ne.s32.totalorder %s180, %s181
      %p190 = scmp.eq.s32.totalorder %s20, 0
      %p191 = por %p189, %p190
      %p192 = scmp.ne.s32.totalorder %s180, %s181
      %p193 = scmp.eq.s32.totalorder %s21, 3
      %p194 = por %p192, %p193
      %p196 = scmp.ne.s32.totalorder %s181, %s195
      %p197 = scmp.eq.s32.totalorder %s21, 0
      %p198 = por %p196, %p197
      %s199 = ssub.s32 %s22, %s34
      %p200 = scmp.eq.s32.totalorder %s199, 0
      %s202 = sadd.s32 %s201, 1
      %s203 = scalar_select %p200, %s201, %s202
      %p206 = pneg %p200
      %p207 = scmp.eq.s32.totalorder %s15, 3
      %p208 = por %p206, %p207
      %p209 = scmp.ne.s32.totalorder %s201, %s204
      %p210 = scmp.eq.s32.totalorder %s15, 0
      %p211 = por %p209, %p210
      %p212 = scmp.ne.s32.totalorder %s201, %s204
      %p213 = scmp.eq.s32.totalorder %s20, 3
      %p214 = por %p212, %p213
      %p215 = scmp.ne.s32.totalorder %s204, %s205
      %p216 = scmp.eq.s32.totalorder %s20, 0
      %p217 = por %p215, %p216
      %p218 = scmp.ne.s32.totalorder %s204, %s205
      %p219 = scmp.eq.s32.totalorder %s21, 3
      %p220 = por %p218, %p219
      %p222 = scmp.ne.s32.totalorder %s205, %s221
      %p223 = scmp.eq.s32.totalorder %s21, 0
      %p224 = por %p222, %p223
      %s225 = ssub.s32 %s22, %s34
      %p226 = scmp.eq.s32.totalorder %s225, 0
      %s228 = sadd.s32 %s227, 1
      %s229 = scalar_select %p226, %s227, %s228
      %p232 = pneg %p226
      %p233 = scmp.eq.s32.totalorder %s15, 3
      %p234 = por %p232, %p233
      %p235 = scmp.ne.s32.totalorder %s227, %s230
      %p236 = scmp.eq.s32.totalorder %s15, 0
      %p237 = por %p235, %p236
      %p238 = scmp.ne.s32.totalorder %s227, %s230
      %p239 = scmp.eq.s32.totalorder %s20, 3
      %p240 = por %p238, %p239
      %p241 = scmp.ne.s32.totalorder %s230, %s231
      %p242 = scmp.eq.s32.totalorder %s20, 0
      %p243 = por %p241, %p242
      %p244 = scmp.ne.s32.totalorder %s230, %s231
      %p245 = scmp.eq.s32.totalorder %s21, 3
      %p246 = por %p244, %p245
      %p248 = scmp.ne.s32.totalorder %s231, %s247
      %p249 = scmp.eq.s32.totalorder %s21, 0
      %p250 = por %p248, %p249
      %p251 = scmp.le.s32.totalorder 1, %s15
      %p252 = scmp.lt.s32.totalorder %s15, 5
      %p253 = pnand %p251, %p252
      %p254 = pneg %p253
      // Predicated region
      $region9: #{tpu_custom_call.1} parent=5 // pred_check
        _
      $region10: #{tpu_custom_call.1} parent=5 // pred_check_branch
        %256 = sbr.rel (%p253) target = $region12
      $region11: #{tpu_custom_call.1} parent=5 // pred_region
        %s257 = ssub.s32 %s15, 1
        // Predicated region
        $region13: #{tpu_custom_call.1} parent=11 // pred_check
          %p258 = pneg %p102
        $region14: #{tpu_custom_call.1} parent=11 // pred_check_branch
          %260 = sbr.rel (%p258) target = $region16
        $region15: #{tpu_custom_call.1} parent=11 // pred_region
          _
        $region16: #{tpu_custom_call.1} parent=11 // pred_fallthru
          _
        // Predicated region
        $region17: #{tpu_custom_call.1} parent=11 // pred_check
          %p261 = pneg %p123
        $region18: #{tpu_custom_call.1} parent=11 // pred_check_branch
          %263 = sbr.rel (%p261) target = $region20
        $region19: #{tpu_custom_call.1} parent=11 // pred_region
          _
        $region20: #{tpu_custom_call.1} parent=11 // pred_fallthru
          _
        // Predicated region
        $region21: #{tpu_custom_call.1} parent=11 // pred_check
          %p264 = pneg %p170
        $region22: #{tpu_custom_call.1} parent=11 // pred_check_branch
          %266 = sbr.rel (%p264) target = $region24
        $region23: #{tpu_custom_call.1} parent=11 // pred_region
          _
        $region24: #{tpu_custom_call.1} parent=11 // pred_fallthru
          _
        // Predicated region
        $region25: #{tpu_custom_call.1} parent=11 // pred_check
          %p267 = pneg %p191
        $region26: #{tpu_custom_call.1} parent=11 // pred_check_branch
          %269 = sbr.rel (%p267) target = $region28
        $region27: #{tpu_custom_call.1} parent=11 // pred_region
          _
        $region28: #{tpu_custom_call.1} parent=11 // pred_fallthru
          _
      $region12: #{tpu_custom_call.1} parent=5 // pred_fallthru
        _
      %p270 = scmp.lt.s32.totalorder %s15, 4
      // Predicated region
      $region29: #{tpu_custom_call.1} parent=5 // pred_check
        %p271 = pneg %p270
      $region30: #{tpu_custom_call.1} parent=5 // pred_check_branch
        %273 = sbr.rel (%p271) target = $region32
      $region31: #{tpu_custom_call.1} parent=5 // pred_region
        // Predicated region
        $region33: #{tpu_custom_call.1} parent=31 // pred_check
          %p274 = pneg %p49
        $region34: #{tpu_custom_call.1} parent=31 // pred_check_branch
          %276 = sbr.rel (%p274) target = $region36
        $region35: #{tpu_custom_call.1} parent=31 // pred_region
          %s277 = sand.u32 %s39, 1
          %s278 = sand.u32 %s39, 1
          %s279 = smul.addr %s278, 64
          %s280 = scalar_lea.vmem [#allocation4], %s279
          %s281 = smul.u32 16, %s22
          %s282 = smul.addr %s281, 2
          %s283 = sadd.s32 %s23, %s282
          %s284 = smul.addr %s283, 4
          %s285 = scalar_lea.vmem %s0, %s284
          // Predicated region
          $region37: #{tpu_custom_call.1} parent=35 // pred_check
            _
          $region38: #{tpu_custom_call.1} parent=35 // pred_check_branch
            %287 = sbr.rel (0) target = $region40
          $region39: #{tpu_custom_call.1} parent=35 // pred_region
            // Predicated region
            $region41: #{tpu_custom_call.1} parent=39 // pred_check
              _
            $region42: #{tpu_custom_call.1} parent=39 // pred_check_branch
              %289 = sbr.rel target = $region44
            $region43: #{tpu_custom_call.1} parent=39 // pred_region
              // Predicated region
              $region56: #{tpu_custom_call.1} parent=43 // pred_check
                _
              $region57: #{tpu_custom_call.1} parent=43 // pred_check_branch
                %335 = sbr.rel (0) target = $region59
              $region58: #{tpu_custom_call.1} parent=43 // pred_region
                loop: start=0, step=1, limit=1
                $region60: #{tpu_custom_call.1} parent=58 // loop_pre_header
                  _
                $region61: #{tpu_custom_call.1} parent=58 // loop_header
                  %s337 = sphi 0, %s341
                  %p338 = scmp.ge.s32.totalorder %s337, 1
                  %s342 = sphi %s285, %s285
                  %s343 = sphi %s280, %s280
                $region62: #{tpu_custom_call.1} parent=58 // loop_header_branch
                  %340 = sbr.rel (%p338) target = $region66
                $region63: #{tpu_custom_call.1} parent=58 // loop_body
                  _
                $region64: #{tpu_custom_call.1} parent=58 // loop_footer
                  %s341 = sadd.s32 1, %s337
                $region65: #{tpu_custom_call.1} parent=58 // loop_footer_branch
                  %336 = sbr.rel target = $region61
                $region66: #{tpu_custom_call.1} parent=58 // loop_exit
                  _
                %s345 = ssub.s32 16, 1
                loop: start=0, step=1, limit=1
                $region67: #{tpu_custom_call.1} parent=58 // loop_pre_header
                  _
                $region68: #{tpu_custom_call.1} parent=58 // loop_header
                  %s347 = sphi 0, %s351
                  %p348 = scmp.ge.s32.totalorder %s347, 1
                  %s352 = sphi %s285, %s285
                  %s353 = sphi %s280, %s280
                $region69: #{tpu_custom_call.1} parent=58 // loop_header_branch
                  %350 = sbr.rel (%p348) target = $region73
                $region70: #{tpu_custom_call.1} parent=58 // loop_body
                  %v354 = vld [vmem:[%s352] sm:%s345]
                  %355 = vst [vmem:[%s353] sm:%s345] %v354
                  %v356 = vld [vmem:[%s352 + $0x8] sm:%s345]
                  %357 = vst [vmem:[%s353 + $0x4] sm:%s345] %v356
                  %v358 = vld [vmem:[%s352 + $0x10] sm:%s345]
                  %359 = vst [vmem:[%s353 + $0x8] sm:%s345] %v358
                  %v360 = vld [vmem:[%s352 + $0x18] sm:%s345]
                  %361 = vst [vmem:[%s353 + $0xc] sm:%s345] %v360
                  %v362 = vld [vmem:[%s352 + $0x20] sm:%s345]
                  %363 = vst [vmem:[%s353 + $0x10] sm:%s345] %v362
                  %v364 = vld [vmem:[%s352 + $0x28] sm:%s345]
                  %365 = vst [vmem:[%s353 + $0x14] sm:%s345] %v364
                  %v366 = vld [vmem:[%s352 + $0x30] sm:%s345]
                  %367 = vst [vmem:[%s353 + $0x18] sm:%s345] %v366
                  %v368 = vld [vmem:[%s352 + $0x38] sm:%s345]
                  %369 = vst [vmem:[%s353 + $0x1c] sm:%s345] %v368
                  %v370 = vld [vmem:[%s352 + $0x40] sm:%s345]
                  %371 = vst [vmem:[%s353 + $0x20] sm:%s345] %v370
                  %v372 = vld [vmem:[%s352 + $0x48] sm:%s345]
                  %373 = vst [vmem:[%s353 + $0x24] sm:%s345] %v372
                  %v374 = vld [vmem:[%s352 + $0x50] sm:%s345]
                  %375 = vst [vmem:[%s353 + $0x28] sm:%s345] %v374
                  %v376 = vld [vmem:[%s352 + $0x58] sm:%s345]
                  %377 = vst [vmem:[%s353 + $0x2c] sm:%s345] %v376
                  %v378 = vld [vmem:[%s352 + $0x60] sm:%s345]
                  %379 = vst [vmem:[%s353 + $0x30] sm:%s345] %v378
                  %v380 = vld [vmem:[%s352 + $0x68] sm:%s345]
                  %381 = vst [vmem:[%s353 + $0x34] sm:%s345] %v380
                  %v382 = vld [vmem:[%s352 + $0x70] sm:%s345]
                  %383 = vst [vmem:[%s353 + $0x38] sm:%s345] %v382
                  %v384 = vld [vmem:[%s352 + $0x78] sm:%s345]
                  %385 = vst [vmem:[%s353 + $0x3c] sm:%s345] %v384
                $region71: #{tpu_custom_call.1} parent=58 // loop_footer
                  %s351 = sadd.s32 1, %s347
                $region72: #{tpu_custom_call.1} parent=58 // loop_footer_branch
                  %346 = sbr.rel target = $region68
                $region73: #{tpu_custom_call.1} parent=58 // loop_exit
                  _
              $region59: #{tpu_custom_call.1} parent=43 // pred_fallthru
                _
            $region44: #{tpu_custom_call.1} parent=39 // pred_fallthru
              _
            // Predicated region
            $region45: #{tpu_custom_call.1} parent=39 // pred_check
              _
            $region46: #{tpu_custom_call.1} parent=39 // pred_check_branch
              %291 = sbr.rel (0) target = $region48
            $region47: #{tpu_custom_call.1} parent=39 // pred_region
              %s293 = ssub.s32 16, 1
              loop: start=0, step=1, limit=1
              $region49: #{tpu_custom_call.1} parent=47 // loop_pre_header
                _
              $region50: #{tpu_custom_call.1} parent=47 // loop_header
                %s295 = sphi 0, %s299
                %p296 = scmp.ge.s32.totalorder %s295, 1
                %s300 = sphi %s285, %s285
                %s301 = sphi %s280, %s280
              $region51: #{tpu_custom_call.1} parent=47 // loop_header_branch
                %298 = sbr.rel (%p296) target = $region55
              $region52: #{tpu_custom_call.1} parent=47 // loop_body
                %v302 = vld [vmem:[%s300] sm:%s293]
                %303 = vst [vmem:[%s301] sm:%s293] %v302
                %v304 = vld [vmem:[%s300 + $0x8] sm:%s293]
                %305 = vst [vmem:[%s301 + $0x4] sm:%s293] %v304
                %v306 = vld [vmem:[%s300 + $0x10] sm:%s293]
                %307 = vst [vmem:[%s301 + $0x8] sm:%s293] %v306
                %v308 = vld [vmem:[%s300 + $0x18] sm:%s293]
                %309 = vst [vmem:[%s301 + $0xc] sm:%s293] %v308
                %v310 = vld [vmem:[%s300 + $0x20] sm:%s293]
                %311 = vst [vmem:[%s301 + $0x10] sm:%s293] %v310
                %v312 = vld [vmem:[%s300 + $0x28] sm:%s293]
                %313 = vst [vmem:[%s301 + $0x14] sm:%s293] %v312
                %v314 = vld [vmem:[%s300 + $0x30] sm:%s293]
                %315 = vst [vmem:[%s301 + $0x18] sm:%s293] %v314
                %v316 = vld [vmem:[%s300 + $0x38] sm:%s293]
                %317 = vst [vmem:[%s301 + $0x1c] sm:%s293] %v316
                %v318 = vld [vmem:[%s300 + $0x40] sm:%s293]
                %319 = vst [vmem:[%s301 + $0x20] sm:%s293] %v318
                %v320 = vld [vmem:[%s300 + $0x48] sm:%s293]
                %321 = vst [vmem:[%s301 + $0x24] sm:%s293] %v320
                %v322 = vld [vmem:[%s300 + $0x50] sm:%s293]
                %323 = vst [vmem:[%s301 + $0x28] sm:%s293] %v322
                %v324 = vld [vmem:[%s300 + $0x58] sm:%s293]
                %325 = vst [vmem:[%s301 + $0x2c] sm:%s293] %v324
                %v326 = vld [vmem:[%s300 + $0x60] sm:%s293]
                %327 = vst [vmem:[%s301 + $0x30] sm:%s293] %v326
                %v328 = vld [vmem:[%s300 + $0x68] sm:%s293]
                %329 = vst [vmem:[%s301 + $0x34] sm:%s293] %v328
                %v330 = vld [vmem:[%s300 + $0x70] sm:%s293]
                %331 = vst [vmem:[%s301 + $0x38] sm:%s293] %v330
                %v332 = vld [vmem:[%s300 + $0x78] sm:%s293]
                %333 = vst [vmem:[%s301 + $0x3c] sm:%s293] %v332
              $region53: #{tpu_custom_call.1} parent=47 // loop_footer
                %s299 = sadd.s32 1, %s295
              $region54: #{tpu_custom_call.1} parent=47 // loop_footer_branch
                %294 = sbr.rel target = $region50
              $region55: #{tpu_custom_call.1} parent=47 // loop_exit
                _
            $region48: #{tpu_custom_call.1} parent=39 // pred_fallthru
              _
          $region40: #{tpu_custom_call.1} parent=35 // pred_fallthru
            _
          %386 = vnop
        $region36: #{tpu_custom_call.1} parent=31 // pred_fallthru
          _
        // Predicated region
        $region74: #{tpu_custom_call.1} parent=31 // pred_check
          %p387 = pneg %p75
        $region75: #{tpu_custom_call.1} parent=31 // pred_check_branch
          %389 = sbr.rel (%p387) target = $region77
        $region76: #{tpu_custom_call.1} parent=31 // pred_region
          %s390 = smul.u32 16, %s23
          %p391 = scmp.lt.s32.totalorder %s390, 31
          %s392 = scalar_select %p391, %s390, 31
          %s393 = smul.addr %s392, 4
          %s394 = scalar_lea.vmem %s1, %s393
          %s395 = smul.u32 16, %s23
        $region77: #{tpu_custom_call.1} parent=31 // pred_fallthru
          _
        // Predicated region
        $region78: #{tpu_custom_call.1} parent=31 // pred_check
          %p396 = pneg %p143
        $region79: #{tpu_custom_call.1} parent=31 // pred_check_branch
          %398 = sbr.rel (%p396) target = $region81
        $region80: #{tpu_custom_call.1} parent=31 // pred_region
          %s399 = smul.u32 16, %s22
          %p400 = scmp.lt.s32.totalorder %s399, 31
          %s401 = scalar_select %p400, %s399, 31
          %s402 = smul.addr %s401, 8
          %s403 = scalar_lea.vmem %s4, %s402
          %s404 = smul.u32 16, %s22
        $region81: #{tpu_custom_call.1} parent=31 // pred_fallthru
          _
      $region32: #{tpu_custom_call.1} parent=5 // pred_fallthru
        _
      %p405 = scmp.le.s32.totalorder 1, %s15
      %p406 = scmp.lt.s32.totalorder %s15, 5
      %p407 = pnand %p405, %p406
      %p408 = pneg %p407
      // Predicated region
      $region82: #{tpu_custom_call.1} parent=5 // pred_check
        _
      $region83: #{tpu_custom_call.1} parent=5 // pred_check_branch
        %410 = sbr.rel (%p407) target = $region85
      $region84: #{tpu_custom_call.1} parent=5 // pred_region
        %s411 = ssub.s32 %s15, 1
        %s412 = sand.u32 %s42, 1
        %s413 = sand.u32 %s42, 1
        %s414 = smul.addr %s413, 64
        %s415 = scalar_lea.vmem [#allocation4], %s414
        // Predicated region
        $region86: #{tpu_custom_call.1} parent=84 // pred_check
          %p416 = pneg %p55
        $region87: #{tpu_custom_call.1} parent=84 // pred_check_branch
          %418 = sbr.rel (%p416) target = $region89
        $region88: #{tpu_custom_call.1} parent=84 // pred_region
          _
        $region89: #{tpu_custom_call.1} parent=84 // pred_fallthru
          _
        %s419 = sand.u32 %s42, 1
        %s420 = sand.u32 %s42, 1
        %s421 = smul.addr %s420, 64
        %s422 = scalar_lea.vmem [#allocation4], %s421
        %p423 = pneg %p55
        %p424 = pneg %p52
        %s425 = smul.u32 16, %s25
        %p426 = scmp.lt.s32.totalorder %s425, 31
        %s427 = scalar_select %p426, %s425, 31
        %s428 = smul.addr %s427, 4
        %s429 = scalar_lea.vmem %s1, %s428
        %p430 = pneg %p81
        %p431 = pneg %p78
        %p432 = pneg %p102
        %p433 = pneg %p99
        %p434 = pneg %p123
        %p435 = pneg %p120
        %s436 = smul.u32 16, %s24
        %p437 = scmp.lt.s32.totalorder %s436, 31
        %s438 = scalar_select %p437, %s436, 31
        %s439 = smul.addr %s438, 8
        %s440 = scalar_lea.vmem %s4, %s439
        %p441 = pneg %p149
        %p442 = pneg %p146
        %p443 = pneg %p170
        %p444 = pneg %p167
        %p445 = pneg %p191
        %p446 = pneg %p188
        %p447 = pneg %p217
        %p448 = pneg %p214
        %s449 = smul.u32 16, %s24
        %p450 = scmp.lt.s32.totalorder %s449, 31
        %s451 = scalar_select %p450, %s449, 31
        %s452 = smul.addr %s451, 8
        %s453 = scalar_lea.vmem %s7, %s452
        %p454 = pneg %p243
        %p455 = pneg %p240
        %s456 = smul.u32 16, %s24
        %p457 = scmp.lt.s32.totalorder %s456, 31
        %s458 = scalar_select %p457, %s456, 31
        %s459 = smul.addr %s458, 4
        %s460 = scalar_lea.vmem %s8, %s459
        %s461 = smul.u32 16, %s24
        %s462 = smul.u32 16, %s25
        %p463 = scmp.lt.s32.totalorder %s462, 31
        %s464 = scalar_select %p463, %s462, 31
        %s465 = smul.addr %s464, 4
        %s466 = scalar_lea.vmem %s1, %s465
        %s467 = smul.u32 16, %s25
        %s468 = smul.u32 16, %s24
        %p469 = scmp.lt.s32.totalorder %s468, 31
        %s470 = scalar_select %p469, %s468, 31
        %s471 = smul.addr %s470, 8
        %s472 = scalar_lea.vmem %s4, %s471
        %s473 = smul.u32 16, %s24
        %s474 = smul.u32 16, %s24
        %p475 = scmp.lt.s32.totalorder %s474, 31
        %s476 = scalar_select %p475, %s474, 31
        %s477 = smul.addr %s476, 8
        %s478 = scalar_lea.vmem %s7, %s477
        %s479 = smul.u32 16, %s24
        %s480 = smul.u32 16, %s24
        %p481 = scmp.lt.s32.totalorder %s480, 31
        %s482 = scalar_select %p481, %s480, 31
        %s483 = smul.addr %s482, 4
        %s484 = scalar_lea.vmem %s8, %s483
        %s485 = smul.u32 16, %s24
        %p487 = scmp.eq.s32.totalorder %s25, 0
        // Predicated region
        $region90: #{tpu_custom_call.1} parent=84 // pred_check
          %p488 = pneg %p487
        $region91: #{tpu_custom_call.1} parent=84 // pred_check_branch
          %490 = sbr.rel (%p488) target = $region93
        $region92: #{tpu_custom_call.1} parent=84 // pred_region
          %vm491 = vcmask 261120
          %492 = vst.msk [vmem:[#allocation2] sm:$0xff] %vm491, 0.0
          %493 = vst.msk [vmem:[#allocation2 + $0x8] sm:$0xff] %vm491, 0.0
          %494 = vst.msk [vmem:[#allocation2 + $0x10] sm:$0xff] %vm491, 0.0
          %495 = vst.msk [vmem:[#allocation2 + $0x18] sm:$0xff] %vm491, 0.0
          %496 = vst.msk [vmem:[#allocation2 + $0x20] sm:$0xff] %vm491, 0.0
          %497 = vst.msk [vmem:[#allocation2 + $0x28] sm:$0xff] %vm491, 0.0
          %498 = vst.msk [vmem:[#allocation2 + $0x30] sm:$0xff] %vm491, 0.0
          %499 = vst.msk [vmem:[#allocation2 + $0x38] sm:$0xff] %vm491, 0.0
          %500 = vst.msk [vmem:[#allocation2 + $0x40] sm:$0xff] %vm491, 0.0
          %501 = vst.msk [vmem:[#allocation2 + $0x48] sm:$0xff] %vm491, 0.0
          %502 = vst.msk [vmem:[#allocation2 + $0x50] sm:$0xff] %vm491, 0.0
          %503 = vst.msk [vmem:[#allocation2 + $0x58] sm:$0xff] %vm491, 0.0
          %504 = vst.msk [vmem:[#allocation2 + $0x60] sm:$0xff] %vm491, 0.0
          %505 = vst.msk [vmem:[#allocation2 + $0x68] sm:$0xff] %vm491, 0.0
          %506 = vst.msk [vmem:[#allocation2 + $0x70] sm:$0xff] %vm491, 0.0
          %507 = vst.msk [vmem:[#allocation2 + $0x78] sm:$0xff] %vm491, 0.0
        $region93: #{tpu_custom_call.1} parent=84 // pred_fallthru
          _
        %v508 = vld [vmem:[%s466] sm:$0xf]
        %v509 = vld [vmem:[%s466 + $0x4] sm:$0xf]
        %v510 = vld [vmem:[%s466 + $0x8] sm:$0xf]
        %v511 = vld [vmem:[%s466 + $0xc] sm:$0xf]
        %v512 = vld [vmem:[%s466 + $0x10] sm:$0xf]
        %v513 = vld [vmem:[%s466 + $0x14] sm:$0xf]
        %v514 = vld [vmem:[%s466 + $0x18] sm:$0xf]
        %v515 = vld [vmem:[%s466 + $0x1c] sm:$0xf]
        %v516 = vld [vmem:[%s466 + $0x20] sm:$0xf]
        %v517 = vld [vmem:[%s466 + $0x24] sm:$0xf]
        %v518 = vld [vmem:[%s466 + $0x28] sm:$0xf]
        %v519 = vld [vmem:[%s466 + $0x2c] sm:$0xf]
        %v520 = vld [vmem:[%s466 + $0x30] sm:$0xf]
        %v521 = vld [vmem:[%s466 + $0x34] sm:$0xf]
        %v522 = vld [vmem:[%s466 + $0x38] sm:$0xf]
        %v523 = vld [vmem:[%s466 + $0x3c] sm:$0xf]
        %v524 = vld [vmem:[%s2] sm:$0xf]
        %v541 = vunpack.c.l.b16 %v508
        %v542 = vunpack.c.l.b16 %v509
        %v543 = vunpack.c.l.b16 %v510
        %v544 = vunpack.c.l.b16 %v511
        %v545 = vunpack.c.l.b16 %v512
        %v546 = vunpack.c.l.b16 %v513
        %v547 = vunpack.c.l.b16 %v514
        %v548 = vunpack.c.l.b16 %v515
        %v549 = vunpack.c.l.b16 %v516
        %v550 = vunpack.c.l.b16 %v517
        %v551 = vunpack.c.l.b16 %v518
        %v552 = vunpack.c.l.b16 %v519
        %v553 = vunpack.c.l.b16 %v520
        %v554 = vunpack.c.l.b16 %v521
        %v555 = vunpack.c.l.b16 %v522
        %v556 = vunpack.c.l.b16 %v523
        %v557 = vpack.c.b16 %v542, %v541
        %v558 = vpack.c.b16 %v544, %v543
        %v559 = vpack.c.b16 %v546, %v545
        %v560 = vpack.c.b16 %v548, %v547
        %v561 = vpack.c.b16 %v550, %v549
        %v562 = vpack.c.b16 %v552, %v551
        %v563 = vpack.c.b16 %v554, %v553
        %v564 = vpack.c.b16 %v556, %v555
        %vm565 = vcmask 64512
        %v567 = vsel %vm565, %v557, 0
        %v570 = vsel %vm565, %v558, 0
        %v573 = vsel %vm565, %v559, 0
        %v576 = vsel %vm565, %v560, 0
        %v579 = vsel %vm565, %v561, 0
        %v582 = vsel %vm565, %v562, 0
        %v585 = vsel %vm565, %v563, 0
        %v588 = vsel %vm565, %v564, 0
        %vm590 = vcmask 1043456
        %v592 = vsel %vm590, %v524, 0
        %594 = vmatprep.subr.bf16.mxu0 0
        %595 = vmatpush1.bf16.msra.mxu0 0
        %596 = vmatprep.subr.bf16.mxu0 0
        %597 = vmatpush1.bf16.msra.mxu0 0
        %598 = vmatprep.subr.bf16.mxu0 0
        %599 = vmatpush1.bf16.msra.mxu0 0
        %600 = vmatprep.subr.bf16.mxu0 0
        %601 = vmatpush1.bf16.msra.mxu0 0
        %602 = vmatprep.subr.bf16.mxu0 0
        %603 = vmatpush1.bf16.msra.mxu0 0
        %604 = vmatprep.subr.bf16.mxu0 0
        %605 = vmatpush1.bf16.msra.mxu0 0
        %606 = vmatprep.subr.bf16.mxu0 0
        %607 = vmatpush1.bf16.msra.mxu0 0
        %608 = vmatprep.subr.bf16.mxu0 0
        %609 = vmatpush1.bf16.msra.mxu0 %v592
        %610 = vmatprep.subr.bf16.mxu0 0
        %611 = vmatpush2.bf16.msra.mxu0 0
        %612 = vmatprep.subr.bf16.mxu0 0
        %613 = vmatpush2.bf16.msra.mxu0 0
        %614 = vmatprep.subr.bf16.mxu0 0
        %615 = vmatpush2.bf16.msra.mxu0 0
        %616 = vmatprep.subr.bf16.mxu0 0
        %617 = vmatpush2.bf16.msra.mxu0 0
        %618 = vmatprep.subr.bf16.mxu0 0
        %619 = vmatpush2.bf16.msra.mxu0 0
        %620 = vmatprep.subr.bf16.mxu0 0
        %621 = vmatpush2.bf16.msra.mxu0 0
        %622 = vmatprep.subr.bf16.mxu0 0
        %623 = vmatpush2.bf16.msra.mxu0 0
        %624 = vmatprep.subr.bf16.mxu0 0
        %625 = vmatpush2.bf16.msra.mxu0 0
        %626 = vmatprep.mubr.bf16.mxu0 0
        %627 = vmatmul.mubr.bf16.gmra.mxu0 %v567
        %v628 = vpop.f32.mrf.mxu0
        %v629 = vadd.f32 0.0, %v628
        %v630 = vpop.f32.mrf.mxu0
        %v631 = vpop.f32.mrf.mxu0
        %v632 = vadd.f32 0.0, %v631
        %v633 = vpop.f32.mrf.mxu0
        %634 = vmatprep.mubr.bf16.mxu0 0
        %635 = vmatmul.mubr.bf16.gmra.mxu0 %v570
        %v636 = vpop.f32.mrf.mxu0
        %v637 = vadd.f32 0.0, %v636
        %v638 = vpop.f32.mrf.mxu0
        %v639 = vpop.f32.mrf.mxu0
        %v640 = vadd.f32 0.0, %v639
        %v641 = vpop.f32.mrf.mxu0
        %642 = vmatprep.mubr.bf16.mxu0 0
        %643 = vmatmul.mubr.bf16.gmra.mxu0 %v573
        %v644 = vpop.f32.mrf.mxu0
        %v645 = vadd.f32 0.0, %v644
        %v646 = vpop.f32.mrf.mxu0
        %v647 = vpop.f32.mrf.mxu0
        %v648 = vadd.f32 0.0, %v647
        %v649 = vpop.f32.mrf.mxu0
        %650 = vmatprep.mubr.bf16.mxu0 0
        %651 = vmatmul.mubr.bf16.gmra.mxu0 %v576
        %v652 = vpop.f32.mrf.mxu0
        %v653 = vadd.f32 0.0, %v652
        %v654 = vpop.f32.mrf.mxu0
        %v655 = vpop.f32.mrf.mxu0
        %v656 = vadd.f32 0.0, %v655
        %v657 = vpop.f32.mrf.mxu0
        %658 = vmatprep.mubr.bf16.mxu0 0
        %659 = vmatmul.mubr.bf16.gmra.mxu0 %v579
        %v660 = vpop.f32.mrf.mxu0
        %v661 = vadd.f32 0.0, %v660
        %v662 = vpop.f32.mrf.mxu0
        %v663 = vpop.f32.mrf.mxu0
        %v664 = vadd.f32 0.0, %v663
        %v665 = vpop.f32.mrf.mxu0
        %666 = vmatprep.mubr.bf16.mxu0 0
        %667 = vmatmul.mubr.bf16.gmra.mxu0 %v582
        %v668 = vpop.f32.mrf.mxu0
        %v669 = vadd.f32 0.0, %v668
        %v670 = vpop.f32.mrf.mxu0
        %v671 = vpop.f32.mrf.mxu0
        %v672 = vadd.f32 0.0, %v671
        %v673 = vpop.f32.mrf.mxu0
        %674 = vmatprep.mubr.bf16.mxu0 0
        %675 = vmatmul.mubr.bf16.gmra.mxu0 %v585
        %v676 = vpop.f32.mrf.mxu0
        %v677 = vadd.f32 0.0, %v676
        %v678 = vpop.f32.mrf.mxu0
        %v679 = vpop.f32.mrf.mxu0
        %v680 = vadd.f32 0.0, %v679
        %v681 = vpop.f32.mrf.mxu0
        %682 = vmatprep.mubr.bf16.mxu0 0
        %683 = vmatmul.mubr.bf16.gmra.mxu0 %v588
        %v684 = vpop.f32.mrf.mxu0
        %v685 = vadd.f32 0.0, %v684
        %v686 = vpop.f32.mrf.mxu0
        %v687 = vpop.f32.mrf.mxu0
        %v688 = vadd.f32 0.0, %v687
        %v689 = vpop.f32.mrf.mxu0
        %690 = vdwg.mxu0
        %v691 = vpack.c.bf16 %v632, %v629
        %v692 = vpack.c.bf16 %v640, %v637
        %v693 = vpack.c.bf16 %v648, %v645
        %v694 = vpack.c.bf16 %v656, %v653
        %v695 = vpack.c.bf16 %v664, %v661
        %v696 = vpack.c.bf16 %v672, %v669
        %v697 = vpack.c.bf16 %v680, %v677
        %v698 = vpack.c.bf16 %v688, %v685
        %v699 = vld [vmem:[#allocation2] sm:$0xff]
        %v700 = vld [vmem:[#allocation2 + $0x8] sm:$0xff]
        %v701 = vld [vmem:[#allocation2 + $0x10] sm:$0xff]
        %v702 = vld [vmem:[#allocation2 + $0x18] sm:$0xff]
        %v703 = vld [vmem:[#allocation2 + $0x20] sm:$0xff]
        %v704 = vld [vmem:[#allocation2 + $0x28] sm:$0xff]
        %v705 = vld [vmem:[#allocation2 + $0x30] sm:$0xff]
        %v706 = vld [vmem:[#allocation2 + $0x38] sm:$0xff]
        %v707 = vld [vmem:[#allocation2 + $0x40] sm:$0xff]
        %v708 = vld [vmem:[#allocation2 + $0x48] sm:$0xff]
        %v709 = vld [vmem:[#allocation2 + $0x50] sm:$0xff]
        %v710 = vld [vmem:[#allocation2 + $0x58] sm:$0xff]
        %v711 = vld [vmem:[#allocation2 + $0x60] sm:$0xff]
        %v712 = vld [vmem:[#allocation2 + $0x68] sm:$0xff]
        %v713 = vld [vmem:[#allocation2 + $0x70] sm:$0xff]
        %v714 = vld [vmem:[#allocation2 + $0x78] sm:$0xff]
        %v715 = vld [vmem:[%s415] sm:$0xf]
        %v716 = vld [vmem:[%s415 + $0x4] sm:$0xf]
        %v717 = vld [vmem:[%s415 + $0x8] sm:$0xf]
        %v718 = vld [vmem:[%s415 + $0xc] sm:$0xf]
        %v719 = vld [vmem:[%s415 + $0x10] sm:$0xf]
        %v720 = vld [vmem:[%s415 + $0x14] sm:$0xf]
        %v721 = vld [vmem:[%s415 + $0x18] sm:$0xf]
        %v722 = vld [vmem:[%s415 + $0x1c] sm:$0xf]
        %v723 = vld [vmem:[%s415 + $0x20] sm:$0xf]
        %v724 = vld [vmem:[%s415 + $0x24] sm:$0xf]
        %v725 = vld [vmem:[%s415 + $0x28] sm:$0xf]
        %v726 = vld [vmem:[%s415 + $0x2c] sm:$0xf]
        %v727 = vld [vmem:[%s415 + $0x30] sm:$0xf]
        %v728 = vld [vmem:[%s415 + $0x34] sm:$0xf]
        %v729 = vld [vmem:[%s415 + $0x38] sm:$0xf]
        %v730 = vld [vmem:[%s415 + $0x3c] sm:$0xf]
        %v747 = vunpack.c.l.b16 %v715
        %v748 = vunpack.c.l.b16 %v716
        %v749 = vunpack.c.l.b16 %v717
        %v750 = vunpack.c.l.b16 %v718
        %v751 = vunpack.c.l.b16 %v719
        %v752 = vunpack.c.l.b16 %v720
        %v753 = vunpack.c.l.b16 %v721
        %v754 = vunpack.c.l.b16 %v722
        %v755 = vunpack.c.l.b16 %v723
        %v756 = vunpack.c.l.b16 %v724
        %v757 = vunpack.c.l.b16 %v725
        %v758 = vunpack.c.l.b16 %v726
        %v759 = vunpack.c.l.b16 %v727
        %v760 = vunpack.c.l.b16 %v728
        %v761 = vunpack.c.l.b16 %v729
        %v762 = vunpack.c.l.b16 %v730
        %v763 = vpack.c.b16 %v748, %v747
        %v764 = vpack.c.b16 %v750, %v749
        %v765 = vpack.c.b16 %v752, %v751
        %v766 = vpack.c.b16 %v754, %v753
        %v767 = vpack.c.b16 %v756, %v755
        %v768 = vpack.c.b16 %v758, %v757
        %v769 = vpack.c.b16 %v760, %v759
        %v770 = vpack.c.b16 %v762, %v761
        %779 = vmatprep.subr.bf16.mxu0 0
        %780 = vmatpush1.bf16.msra.mxu0 %v698
        %781 = vmatprep.subr.bf16.mxu0 0
        %782 = vmatpush1.bf16.msra.mxu0 %v697
        %783 = vmatprep.subr.bf16.mxu0 0
        %784 = vmatpush1.bf16.msra.mxu0 %v696
        %785 = vmatprep.subr.bf16.mxu0 0
        %786 = vmatpush1.bf16.msra.mxu0 %v695
        %787 = vmatprep.subr.bf16.mxu0 0
        %788 = vmatpush1.bf16.msra.mxu0 %v694
        %789 = vmatprep.subr.bf16.mxu0 0
        %790 = vmatpush1.bf16.msra.mxu0 %v693
        %791 = vmatprep.subr.bf16.mxu0 0
        %792 = vmatpush1.bf16.msra.mxu0 %v692
        %793 = vmatprep.subr.bf16.mxu0 0
        %794 = vmatpush1.bf16.msra.mxu0 %v691
        %795 = vmatprep.subr.bf16.mxu0 0
        %796 = vmatpush2.bf16.msra.mxu0 0
        %797 = vmatprep.subr.bf16.mxu0 0
        %798 = vmatpush2.bf16.msra.mxu0 0
        %799 = vmatprep.subr.bf16.mxu0 0
        %800 = vmatpush2.bf16.msra.mxu0 0
        %801 = vmatprep.subr.bf16.mxu0 0
        %802 = vmatpush2.bf16.msra.mxu0 0
        %803 = vmatprep.subr.bf16.mxu0 0
        %804 = vmatpush2.bf16.msra.mxu0 0
        %805 = vmatprep.subr.bf16.mxu0 0
        %806 = vmatpush2.bf16.msra.mxu0 0
        %807 = vmatprep.subr.bf16.mxu0 0
        %808 = vmatpush2.bf16.msra.mxu0 0
        %809 = vmatprep.subr.bf16.mxu0 0
        %810 = vmatpush2.bf16.msra.mxu0 0
        %811 = vmatprep.mubr.bf16.mxu0 0
        %812 = vmatmul.mubr.bf16.gmra.mxu0 %v763
        %v813 = vpop.f32.mrf.mxu0
        %v814 = vadd.f32 0.0, %v813
        %v815 = vpop.f32.mrf.mxu0
        %v816 = vpop.f32.mrf.mxu0
        %v817 = vadd.f32 0.0, %v816
        %v818 = vpop.f32.mrf.mxu0
        %819 = vmatprep.mubr.bf16.mxu0 0
        %820 = vmatmul.mubr.bf16.gmra.mxu0 %v764
        %v821 = vpop.f32.mrf.mxu0
        %v822 = vadd.f32 0.0, %v821
        %v823 = vpop.f32.mrf.mxu0
        %v824 = vpop.f32.mrf.mxu0
        %v825 = vadd.f32 0.0, %v824
        %v826 = vpop.f32.mrf.mxu0
        %827 = vmatprep.mubr.bf16.mxu0 0
        %828 = vmatmul.mubr.bf16.gmra.mxu0 %v765
        %v829 = vpop.f32.mrf.mxu0
        %v830 = vadd.f32 0.0, %v829
        %v831 = vpop.f32.mrf.mxu0
        %v832 = vpop.f32.mrf.mxu0
        %v833 = vadd.f32 0.0, %v832
        %v834 = vpop.f32.mrf.mxu0
        %835 = vmatprep.mubr.bf16.mxu0 0
        %836 = vmatmul.mubr.bf16.gmra.mxu0 %v766
        %v837 = vpop.f32.mrf.mxu0
        %v838 = vadd.f32 0.0, %v837
        %v839 = vpop.f32.mrf.mxu0
        %v840 = vpop.f32.mrf.mxu0
        %v841 = vadd.f32 0.0, %v840
        %v842 = vpop.f32.mrf.mxu0
        %843 = vmatprep.mubr.bf16.mxu0 0
        %844 = vmatmul.mubr.bf16.gmra.mxu0 %v767
        %v845 = vpop.f32.mrf.mxu0
        %v846 = vadd.f32 0.0, %v845
        %v847 = vpop.f32.mrf.mxu0
        %v848 = vpop.f32.mrf.mxu0
        %v849 = vadd.f32 0.0, %v848
        %v850 = vpop.f32.mrf.mxu0
        %851 = vmatprep.mubr.bf16.mxu0 0
        %852 = vmatmul.mubr.bf16.gmra.mxu0 %v768
        %v853 = vpop.f32.mrf.mxu0
        %v854 = vadd.f32 0.0, %v853
        %v855 = vpop.f32.mrf.mxu0
        %v856 = vpop.f32.mrf.mxu0
        %v857 = vadd.f32 0.0, %v856
        %v858 = vpop.f32.mrf.mxu0
        %859 = vmatprep.mubr.bf16.mxu0 0
        %860 = vmatmul.mubr.bf16.gmra.mxu0 %v769
        %v861 = vpop.f32.mrf.mxu0
        %v862 = vadd.f32 0.0, %v861
        %v863 = vpop.f32.mrf.mxu0
        %v864 = vpop.f32.mrf.mxu0
        %v865 = vadd.f32 0.0, %v864
        %v866 = vpop.f32.mrf.mxu0
        %867 = vmatprep.mubr.bf16.mxu0 0
        %868 = vmatmul.mubr.bf16.gmra.mxu0 %v770
        %v869 = vpop.f32.mrf.mxu0
        %v870 = vadd.f32 0.0, %v869
        %v871 = vpop.f32.mrf.mxu0
        %v872 = vpop.f32.mrf.mxu0
        %v873 = vadd.f32 0.0, %v872
        %v874 = vpop.f32.mrf.mxu0
        %875 = vdwg.mxu0
        %v876 = vadd.f32 %v699, %v814
        %v877 = vadd.f32 %v700, %v817
        %v878 = vadd.f32 %v701, %v822
        %v879 = vadd.f32 %v702, %v825
        %v880 = vadd.f32 %v703, %v830
        %v881 = vadd.f32 %v704, %v833
        %v882 = vadd.f32 %v705, %v838
        %v883 = vadd.f32 %v706, %v841
        %v884 = vadd.f32 %v707, %v846
        %v885 = vadd.f32 %v708, %v849
        %v886 = vadd.f32 %v709, %v854
        %v887 = vadd.f32 %v710, %v857
        %v888 = vadd.f32 %v711, %v862
        %v889 = vadd.f32 %v712, %v865
        %v890 = vadd.f32 %v713, %v870
        %v891 = vadd.f32 %v714, %v873
        %vm892 = vcmask 261120
        %893 = vst.msk [vmem:[#allocation2] sm:$0xff] %vm892, %v876
        %894 = vst.msk [vmem:[#allocation2 + $0x8] sm:$0xff] %vm892, %v877
        %895 = vst.msk [vmem:[#allocation2 + $0x10] sm:$0xff] %vm892, %v878
        %896 = vst.msk [vmem:[#allocation2 + $0x18] sm:$0xff] %vm892, %v879
        %897 = vst.msk [vmem:[#allocation2 + $0x20] sm:$0xff] %vm892, %v880
        %898 = vst.msk [vmem:[#allocation2 + $0x28] sm:$0xff] %vm892, %v881
        %899 = vst.msk [vmem:[#allocation2 + $0x30] sm:$0xff] %vm892, %v882
        %900 = vst.msk [vmem:[#allocation2 + $0x38] sm:$0xff] %vm892, %v883
        %901 = vst.msk [vmem:[#allocation2 + $0x40] sm:$0xff] %vm892, %v884
        %902 = vst.msk [vmem:[#allocation2 + $0x48] sm:$0xff] %vm892, %v885
        %903 = vst.msk [vmem:[#allocation2 + $0x50] sm:$0xff] %vm892, %v886
        %904 = vst.msk [vmem:[#allocation2 + $0x58] sm:$0xff] %vm892, %v887
        %905 = vst.msk [vmem:[#allocation2 + $0x60] sm:$0xff] %vm892, %v888
        %906 = vst.msk [vmem:[#allocation2 + $0x68] sm:$0xff] %vm892, %v889
        %907 = vst.msk [vmem:[#allocation2 + $0x70] sm:$0xff] %vm892, %v890
        %908 = vst.msk [vmem:[#allocation2 + $0x78] sm:$0xff] %vm892, %v891
        %p909 = scmp.eq.s32.totalorder %s25, 1
        // Predicated region
        $region94: #{tpu_custom_call.1} parent=84 // pred_check
          %p910 = pneg %p909
        $region95: #{tpu_custom_call.1} parent=84 // pred_check_branch
          %912 = sbr.rel (%p910) target = $region97
        $region96: #{tpu_custom_call.1} parent=84 // pred_region
          %v913 = vld [vmem:[#allocation2] sm:$0xff]
          %v914 = vld [vmem:[#allocation2 + $0x8] sm:$0xff]
          %v915 = vld [vmem:[#allocation2 + $0x10] sm:$0xff]
          %v916 = vld [vmem:[#allocation2 + $0x18] sm:$0xff]
          %v917 = vld [vmem:[#allocation2 + $0x20] sm:$0xff]
          %v918 = vld [vmem:[#allocation2 + $0x28] sm:$0xff]
          %v919 = vld [vmem:[#allocation2 + $0x30] sm:$0xff]
          %v920 = vld [vmem:[#allocation2 + $0x38] sm:$0xff]
          %v921 = vld [vmem:[#allocation2 + $0x40] sm:$0xff]
          %v922 = vld [vmem:[#allocation2 + $0x48] sm:$0xff]
          %v923 = vld [vmem:[#allocation2 + $0x50] sm:$0xff]
          %v924 = vld [vmem:[#allocation2 + $0x58] sm:$0xff]
          %v925 = vld [vmem:[#allocation2 + $0x60] sm:$0xff]
          %v926 = vld [vmem:[#allocation2 + $0x68] sm:$0xff]
          %v927 = vld [vmem:[#allocation2 + $0x70] sm:$0xff]
          %v928 = vld [vmem:[#allocation2 + $0x78] sm:$0xff]
          %v929 = vld [vmem:[%s3] sm:$0x1]
          %v931 = vlaneseq
          %v932 = vshrl.u32 %v931, 7
          %v933 = vsub.s32 0, %v932
          %v934 = vrot.slane %v929, %v933
          %v936 = vadd.f32 %v913, %v934
          %v937 = vadd.f32 %v914, %v934
          %v938 = vadd.f32 %v915, %v934
          %v939 = vadd.f32 %v916, %v934
          %v940 = vadd.f32 %v917, %v934
          %v941 = vadd.f32 %v918, %v934
          %v942 = vadd.f32 %v919, %v934
          %v943 = vadd.f32 %v920, %v934
          %v944 = vadd.f32 %v921, %v934
          %v945 = vadd.f32 %v922, %v934
          %v946 = vadd.f32 %v923, %v934
          %v947 = vadd.f32 %v924, %v934
          %v948 = vadd.f32 %v925, %v934
          %v949 = vadd.f32 %v926, %v934
          %v950 = vadd.f32 %v927, %v934
          %v951 = vadd.f32 %v928, %v934
          %952 = vst.msk [vmem:[%s478] sm:$0xff] %vm892, %v936
          %953 = vst.msk [vmem:[%s478 + $0x8] sm:$0xff] %vm892, %v937
          %954 = vst.msk [vmem:[%s478 + $0x10] sm:$0xff] %vm892, %v938
          %955 = vst.msk [vmem:[%s478 + $0x18] sm:$0xff] %vm892, %v939
          %956 = vst.msk [vmem:[%s478 + $0x20] sm:$0xff] %vm892, %v940
          %957 = vst.msk [vmem:[%s478 + $0x28] sm:$0xff] %vm892, %v941
          %958 = vst.msk [vmem:[%s478 + $0x30] sm:$0xff] %vm892, %v942
          %959 = vst.msk [vmem:[%s478 + $0x38] sm:$0xff] %vm892, %v943
          %960 = vst.msk [vmem:[%s478 + $0x40] sm:$0xff] %vm892, %v944
          %961 = vst.msk [vmem:[%s478 + $0x48] sm:$0xff] %vm892, %v945
          %962 = vst.msk [vmem:[%s478 + $0x50] sm:$0xff] %vm892, %v946
          %963 = vst.msk [vmem:[%s478 + $0x58] sm:$0xff] %vm892, %v947
          %964 = vst.msk [vmem:[%s478 + $0x60] sm:$0xff] %vm892, %v948
          %965 = vst.msk [vmem:[%s478 + $0x68] sm:$0xff] %vm892, %v949
          %966 = vst.msk [vmem:[%s478 + $0x70] sm:$0xff] %vm892, %v950
          %967 = vst.msk [vmem:[%s478 + $0x78] sm:$0xff] %vm892, %v951
          %v968 = vld [vmem:[%s472] sm:$0xff]
          %v969 = vld [vmem:[%s472 + $0x8] sm:$0xff]
          %v970 = vld [vmem:[%s472 + $0x10] sm:$0xff]
          %v971 = vld [vmem:[%s472 + $0x18] sm:$0xff]
          %v972 = vld [vmem:[%s472 + $0x20] sm:$0xff]
          %v973 = vld [vmem:[%s472 + $0x28] sm:$0xff]
          %v974 = vld [vmem:[%s472 + $0x30] sm:$0xff]
          %v975 = vld [vmem:[%s472 + $0x38] sm:$0xff]
          %v976 = vld [vmem:[%s472 + $0x40] sm:$0xff]
          %v977 = vld [vmem:[%s472 + $0x48] sm:$0xff]
          %v978 = vld [vmem:[%s472 + $0x50] sm:$0xff]
          %v979 = vld [vmem:[%s472 + $0x58] sm:$0xff]
          %v980 = vld [vmem:[%s472 + $0x60] sm:$0xff]
          %v981 = vld [vmem:[%s472 + $0x68] sm:$0xff]
          %v982 = vld [vmem:[%s472 + $0x70] sm:$0xff]
          %v983 = vld [vmem:[%s472 + $0x78] sm:$0xff]
          %v984 = vld [vmem:[%s5] sm:$0x3]
          %vm985 = vcmask 15360
          %v987 = vsel %vm985, %v968, 0
          %v990 = vsel %vm985, %v969, 0
          %v993 = vsel %vm985, %v970, 0
          %v996 = vsel %vm985, %v971, 0
          %v999 = vsel %vm985, %v972, 0
          %v1002 = vsel %vm985, %v973, 0
          %v1005 = vsel %vm985, %v974, 0
          %v1008 = vsel %vm985, %v975, 0
          %v1011 = vsel %vm985, %v976, 0
          %v1014 = vsel %vm985, %v977, 0
          %v1017 = vsel %vm985, %v978, 0
          %v1020 = vsel %vm985, %v979, 0
          %v1023 = vsel %vm985, %v980, 0
          %v1026 = vsel %vm985, %v981, 0
          %v1029 = vsel %vm985, %v982, 0
          %v1032 = vsel %vm985, %v983, 0
          %vm1034 = vcmask 1041408
          %v1036 = vsel %vm1034, %v984, 0
          %1038 = vmatprep.subr.mxu0 0.0
          %1039 = vmatpush1.msra.mxu0 0.0
          %1040 = vmatprep.subr.mxu0 0.0
          %1041 = vmatpush1.msra.mxu0 0.0
          %1042 = vmatprep.subr.mxu0 0.0
          %1043 = vmatpush1.msra.mxu0 0.0
          %1044 = vmatprep.subr.mxu0 0.0
          %1045 = vmatpush1.msra.mxu0 0.0
          %1046 = vmatprep.subr.mxu0 0.0
          %1047 = vmatpush1.msra.mxu0 0.0
          %1048 = vmatprep.subr.mxu0 0.0
          %1049 = vmatpush1.msra.mxu0 0.0
          %1050 = vmatprep.subr.mxu0 0.0
          %1051 = vmatpush1.msra.mxu0 0.0
          %1052 = vmatprep.subr.mxu0 0.0
          %1053 = vmatpush1.msra.mxu0 0.0
          %1054 = vmatprep.subr.mxu0 0.0
          %1055 = vmatpush1.msra.mxu0 0.0
          %1056 = vmatprep.subr.mxu0 0.0
          %1057 = vmatpush1.msra.mxu0 0.0
          %1058 = vmatprep.subr.mxu0 0.0
          %1059 = vmatpush1.msra.mxu0 0.0
          %1060 = vmatprep.subr.mxu0 0.0
          %1061 = vmatpush1.msra.mxu0 0.0
          %1062 = vmatprep.subr.mxu0 0.0
          %1063 = vmatpush1.msra.mxu0 0.0
          %1064 = vmatprep.subr.mxu0 0.0
          %1065 = vmatpush1.msra.mxu0 0.0
          %1066 = vmatprep.subr.mxu0 0.0
          %1067 = vmatpush1.msra.mxu0 0.0
          %1068 = vmatprep.subr.mxu0 0.0
          %1069 = vmatpush1.msra.mxu0 %v1036
          %1070 = vmatprep.subr.mxu0 0.0
          %1071 = vmatpush2.msra.mxu0 0.0
          %1072 = vmatprep.subr.mxu0 0.0
          %1073 = vmatpush2.msra.mxu0 0.0
          %1074 = vmatprep.subr.mxu0 0.0
          %1075 = vmatpush2.msra.mxu0 0.0
          %1076 = vmatprep.subr.mxu0 0.0
          %1077 = vmatpush2.msra.mxu0 0.0
          %1078 = vmatprep.subr.mxu0 0.0
          %1079 = vmatpush2.msra.mxu0 0.0
          %1080 = vmatprep.subr.mxu0 0.0
          %1081 = vmatpush2.msra.mxu0 0.0
          %1082 = vmatprep.subr.mxu0 0.0
          %1083 = vmatpush2.msra.mxu0 0.0
          %1084 = vmatprep.subr.mxu0 0.0
          %1085 = vmatpush2.msra.mxu0 0.0
          %1086 = vmatprep.subr.mxu0 0.0
          %1087 = vmatpush2.msra.mxu0 0.0
          %1088 = vmatprep.subr.mxu0 0.0
          %1089 = vmatpush2.msra.mxu0 0.0
          %1090 = vmatprep.subr.mxu0 0.0
          %1091 = vmatpush2.msra.mxu0 0.0
          %1092 = vmatprep.subr.mxu0 0.0
          %1093 = vmatpush2.msra.mxu0 0.0
          %1094 = vmatprep.subr.mxu0 0.0
          %1095 = vmatpush2.msra.mxu0 0.0
          %1096 = vmatprep.subr.mxu0 0.0
          %1097 = vmatpush2.msra.mxu0 0.0
          %1098 = vmatprep.subr.mxu0 0.0
          %1099 = vmatpush2.msra.mxu0 0.0
          %1100 = vmatprep.subr.mxu0 0.0
          %1101 = vmatpush2.msra.mxu0 0.0
          %1102 = vmatprep.mubr.f32.mxu0 0.0
          %1103 = vmatmul.mubr.f32.gmra.mxu0 %v987
          %v1104 = vpop.f32.mrf.mxu0
          %v1105 = vadd.f32 0.0, %v1104
          %v1106 = vpop.f32.mrf.mxu0
          %1107 = vmatprep.mubr.f32.mxu0 0.0
          %1108 = vmatmul.mubr.f32.gmra.mxu0 %v990
          %v1109 = vpop.f32.mrf.mxu0
          %v1110 = vadd.f32 0.0, %v1109
          %v1111 = vpop.f32.mrf.mxu0
          %1112 = vmatprep.mubr.f32.mxu0 0.0
          %1113 = vmatmul.mubr.f32.gmra.mxu0 %v993
          %v1114 = vpop.f32.mrf.mxu0
          %v1115 = vadd.f32 0.0, %v1114
          %v1116 = vpop.f32.mrf.mxu0
          %1117 = vmatprep.mubr.f32.mxu0 0.0
          %1118 = vmatmul.mubr.f32.gmra.mxu0 %v996
          %v1119 = vpop.f32.mrf.mxu0
          %v1120 = vadd.f32 0.0, %v1119
          %v1121 = vpop.f32.mrf.mxu0
          %1122 = vmatprep.mubr.f32.mxu0 0.0
          %1123 = vmatmul.mubr.f32.gmra.mxu0 %v999
          %v1124 = vpop.f32.mrf.mxu0
          %v1125 = vadd.f32 0.0, %v1124
          %v1126 = vpop.f32.mrf.mxu0
          %1127 = vmatprep.mubr.f32.mxu0 0.0
          %1128 = vmatmul.mubr.f32.gmra.mxu0 %v1002
          %v1129 = vpop.f32.mrf.mxu0
          %v1130 = vadd.f32 0.0, %v1129
          %v1131 = vpop.f32.mrf.mxu0
          %1132 = vmatprep.mubr.f32.mxu0 0.0
          %1133 = vmatmul.mubr.f32.gmra.mxu0 %v1005
          %v1134 = vpop.f32.mrf.mxu0
          %v1135 = vadd.f32 0.0, %v1134
          %v1136 = vpop.f32.mrf.mxu0
          %1137 = vmatprep.mubr.f32.mxu0 0.0
          %1138 = vmatmul.mubr.f32.gmra.mxu0 %v1008
          %v1139 = vpop.f32.mrf.mxu0
          %v1140 = vadd.f32 0.0, %v1139
          %v1141 = vpop.f32.mrf.mxu0
          %1142 = vmatprep.mubr.f32.mxu0 0.0
          %1143 = vmatmul.mubr.f32.gmra.mxu0 %v1011
          %v1144 = vpop.f32.mrf.mxu0
          %v1145 = vadd.f32 0.0, %v1144
          %v1146 = vpop.f32.mrf.mxu0
          %1147 = vmatprep.mubr.f32.mxu0 0.0
          %1148 = vmatmul.mubr.f32.gmra.mxu0 %v1014
          %v1149 = vpop.f32.mrf.mxu0
          %v1150 = vadd.f32 0.0, %v1149
          %v1151 = vpop.f32.mrf.mxu0
          %1152 = vmatprep.mubr.f32.mxu0 0.0
          %1153 = vmatmul.mubr.f32.gmra.mxu0 %v1017
          %v1154 = vpop.f32.mrf.mxu0
          %v1155 = vadd.f32 0.0, %v1154
          %v1156 = vpop.f32.mrf.mxu0
          %1157 = vmatprep.mubr.f32.mxu0 0.0
          %1158 = vmatmul.mubr.f32.gmra.mxu0 %v1020
          %v1159 = vpop.f32.mrf.mxu0
          %v1160 = vadd.f32 0.0, %v1159
          %v1161 = vpop.f32.mrf.mxu0
          %1162 = vmatprep.mubr.f32.mxu0 0.0
          %1163 = vmatmul.mubr.f32.gmra.mxu0 %v1023
          %v1164 = vpop.f32.mrf.mxu0
          %v1165 = vadd.f32 0.0, %v1164
          %v1166 = vpop.f32.mrf.mxu0
          %1167 = vmatprep.mubr.f32.mxu0 0.0
          %1168 = vmatmul.mubr.f32.gmra.mxu0 %v1026
          %v1169 = vpop.f32.mrf.mxu0
          %v1170 = vadd.f32 0.0, %v1169
          %v1171 = vpop.f32.mrf.mxu0
          %1172 = vmatprep.mubr.f32.mxu0 0.0
          %1173 = vmatmul.mubr.f32.gmra.mxu0 %v1029
          %v1174 = vpop.f32.mrf.mxu0
          %v1175 = vadd.f32 0.0, %v1174
          %v1176 = vpop.f32.mrf.mxu0
          %1177 = vmatprep.mubr.f32.mxu0 0.0
          %1178 = vmatmul.mubr.f32.gmra.mxu0 %v1032
          %v1179 = vpop.f32.mrf.mxu0
          %v1180 = vadd.f32 0.0, %v1179
          %v1181 = vpop.f32.mrf.mxu0
          %1182 = vdwg.mxu0
          %v1183 = vmax.f32 %v936, 0.0
          %v1184 = vmax.f32 %v937, 0.0
          %v1185 = vmax.f32 %v938, 0.0
          %v1186 = vmax.f32 %v939, 0.0
          %v1187 = vmax.f32 %v940, 0.0
          %v1188 = vmax.f32 %v941, 0.0
          %v1189 = vmax.f32 %v942, 0.0
          %v1190 = vmax.f32 %v943, 0.0
          %v1191 = vmax.f32 %v944, 0.0
          %v1192 = vmax.f32 %v945, 0.0
          %v1193 = vmax.f32 %v946, 0.0
          %v1194 = vmax.f32 %v947, 0.0
          %v1195 = vmax.f32 %v948, 0.0
          %v1196 = vmax.f32 %v949, 0.0
          %v1197 = vmax.f32 %v950, 0.0
          %v1198 = vmax.f32 %v951, 0.0
          %1199 = vst.msk [vmem:[#allocation3] sm:$0xff] %vm892, %v1183
          %1200 = vst.msk [vmem:[#allocation3 + $0x8] sm:$0xff] %vm892, %v1184
          %1201 = vst.msk [vmem:[#allocation3 + $0x10] sm:$0xff] %vm892, %v1185
          %1202 = vst.msk [vmem:[#allocation3 + $0x18] sm:$0xff] %vm892, %v1186
          %1203 = vst.msk [vmem:[#allocation3 + $0x20] sm:$0xff] %vm892, %v1187
          %1204 = vst.msk [vmem:[#allocation3 + $0x28] sm:$0xff] %vm892, %v1188
          %1205 = vst.msk [vmem:[#allocation3 + $0x30] sm:$0xff] %vm892, %v1189
          %1206 = vst.msk [vmem:[#allocation3 + $0x38] sm:$0xff] %vm892, %v1190
          %1207 = vst.msk [vmem:[#allocation3 + $0x40] sm:$0xff] %vm892, %v1191
          %1208 = vst.msk [vmem:[#allocation3 + $0x48] sm:$0xff] %vm892, %v1192
          %1209 = vst.msk [vmem:[#allocation3 + $0x50] sm:$0xff] %vm892, %v1193
          %1210 = vst.msk [vmem:[#allocation3 + $0x58] sm:$0xff] %vm892, %v1194
          %1211 = vst.msk [vmem:[#allocation3 + $0x60] sm:$0xff] %vm892, %v1195
          %1212 = vst.msk [vmem:[#allocation3 + $0x68] sm:$0xff] %vm892, %v1196
          %1213 = vst.msk [vmem:[#allocation3 + $0x70] sm:$0xff] %vm892, %v1197
          %1214 = vst.msk [vmem:[#allocation3 + $0x78] sm:$0xff] %vm892, %v1198
          %v1215 = vmax.f32 %v1105, 0.0
          %v1216 = vmax.f32 %v1110, 0.0
          %v1217 = vmax.f32 %v1115, 0.0
          %v1218 = vmax.f32 %v1120, 0.0
          %v1219 = vmax.f32 %v1125, 0.0
          %v1220 = vmax.f32 %v1130, 0.0
          %v1221 = vmax.f32 %v1135, 0.0
          %v1222 = vmax.f32 %v1140, 0.0
          %v1223 = vmax.f32 %v1145, 0.0
          %v1224 = vmax.f32 %v1150, 0.0
          %v1225 = vmax.f32 %v1155, 0.0
          %v1226 = vmax.f32 %v1160, 0.0
          %v1227 = vmax.f32 %v1165, 0.0
          %v1228 = vmax.f32 %v1170, 0.0
          %v1229 = vmax.f32 %v1175, 0.0
          %v1230 = vmax.f32 %v1180, 0.0
          %1247 = vrot.lane.b32.xlu0 %v1215, 32
          %v1248 = vpop.permute.xlu0 %1247
          %1249 = vrot.lane.b32.xlu0 %v1216, 32
          %v1250 = vpop.permute.xlu0 %1249
          %1251 = vrot.lane.b32.xlu0 %v1217, 32
          %v1252 = vpop.permute.xlu0 %1251
          %1253 = vrot.lane.b32.xlu0 %v1218, 32
          %v1254 = vpop.permute.xlu0 %1253
          %1255 = vrot.lane.b32.xlu0 %v1219, 32
          %v1256 = vpop.permute.xlu0 %1255
          %1257 = vrot.lane.b32.xlu0 %v1220, 32
          %v1258 = vpop.permute.xlu0 %1257
          %1259 = vrot.lane.b32.xlu0 %v1221, 32
          %v1260 = vpop.permute.xlu0 %1259
          %1261 = vrot.lane.b32.xlu0 %v1222, 32
          %v1262 = vpop.permute.xlu0 %1261
          %1263 = vrot.lane.b32.xlu0 %v1223, 32
          %v1264 = vpop.permute.xlu0 %1263
          %1265 = vrot.lane.b32.xlu0 %v1224, 32
          %v1266 = vpop.permute.xlu0 %1265
          %1267 = vrot.lane.b32.xlu0 %v1225, 32
          %v1268 = vpop.permute.xlu0 %1267
          %1269 = vrot.lane.b32.xlu0 %v1226, 32
          %v1270 = vpop.permute.xlu0 %1269
          %1271 = vrot.lane.b32.xlu0 %v1227, 32
          %v1272 = vpop.permute.xlu0 %1271
          %1273 = vrot.lane.b32.xlu0 %v1228, 32
          %v1274 = vpop.permute.xlu0 %1273
          %1275 = vrot.lane.b32.xlu0 %v1229, 32
          %v1276 = vpop.permute.xlu0 %1275
          %1277 = vrot.lane.b32.xlu0 %v1230, 32
          %v1278 = vpop.permute.xlu0 %1277
          %vm1295 = vcmask 326912
          %1296 = vst.msk [vmem:[#allocation3] sm:$0xff] %vm1295, %v1248
          %1297 = vst.msk [vmem:[#allocation3 + $0x8] sm:$0xff] %vm1295, %v1250
          %1298 = vst.msk [vmem:[#allocation3 + $0x10] sm:$0xff] %vm1295, %v1252
          %1299 = vst.msk [vmem:[#allocation3 + $0x18] sm:$0xff] %vm1295, %v1254
          %1300 = vst.msk [vmem:[#allocation3 + $0x20] sm:$0xff] %vm1295, %v1256
          %1301 = vst.msk [vmem:[#allocation3 + $0x28] sm:$0xff] %vm1295, %v1258
          %1302 = vst.msk [vmem:[#allocation3 + $0x30] sm:$0xff] %vm1295, %v1260
          %1303 = vst.msk [vmem:[#allocation3 + $0x38] sm:$0xff] %vm1295, %v1262
          %1304 = vst.msk [vmem:[#allocation3 + $0x40] sm:$0xff] %vm1295, %v1264
          %1305 = vst.msk [vmem:[#allocation3 + $0x48] sm:$0xff] %vm1295, %v1266
          %1306 = vst.msk [vmem:[#allocation3 + $0x50] sm:$0xff] %vm1295, %v1268
          %1307 = vst.msk [vmem:[#allocation3 + $0x58] sm:$0xff] %vm1295, %v1270
          %1308 = vst.msk [vmem:[#allocation3 + $0x60] sm:$0xff] %vm1295, %v1272
          %1309 = vst.msk [vmem:[#allocation3 + $0x68] sm:$0xff] %vm1295, %v1274
          %1310 = vst.msk [vmem:[#allocation3 + $0x70] sm:$0xff] %vm1295, %v1276
          %1311 = vst.msk [vmem:[#allocation3 + $0x78] sm:$0xff] %vm1295, %v1278
          %v1312 = vld [vmem:[#allocation3] sm:$0xff]
          %v1313 = vld [vmem:[#allocation3 + $0x8] sm:$0xff]
          %v1314 = vld [vmem:[#allocation3 + $0x10] sm:$0xff]
          %v1315 = vld [vmem:[#allocation3 + $0x18] sm:$0xff]
          %v1316 = vld [vmem:[#allocation3 + $0x20] sm:$0xff]
          %v1317 = vld [vmem:[#allocation3 + $0x28] sm:$0xff]
          %v1318 = vld [vmem:[#allocation3 + $0x30] sm:$0xff]
          %v1319 = vld [vmem:[#allocation3 + $0x38] sm:$0xff]
          %v1320 = vld [vmem:[#allocation3 + $0x40] sm:$0xff]
          %v1321 = vld [vmem:[#allocation3 + $0x48] sm:$0xff]
          %v1322 = vld [vmem:[#allocation3 + $0x50] sm:$0xff]
          %v1323 = vld [vmem:[#allocation3 + $0x58] sm:$0xff]
          %v1324 = vld [vmem:[#allocation3 + $0x60] sm:$0xff]
          %v1325 = vld [vmem:[#allocation3 + $0x68] sm:$0xff]
          %v1326 = vld [vmem:[#allocation3 + $0x70] sm:$0xff]
          %v1327 = vld [vmem:[#allocation3 + $0x78] sm:$0xff]
          %v1328 = vpack.c.bf16 %v1313, %v1312
          %v1329 = vpack.c.bf16 %v1315, %v1314
          %v1330 = vpack.c.bf16 %v1317, %v1316
          %v1331 = vpack.c.bf16 %v1319, %v1318
          %v1332 = vpack.c.bf16 %v1321, %v1320
          %v1333 = vpack.c.bf16 %v1323, %v1322
          %v1334 = vpack.c.bf16 %v1325, %v1324
          %v1335 = vpack.c.bf16 %v1327, %v1326
          %v1336 = vld [vmem:[%s6] sm:$0xf]
          %v1337 = vld [vmem:[%s6 + $0x4] sm:$0xf]
          %v1338 = vld [vmem:[%s6 + $0x8] sm:$0xf]
          %v1339 = vld [vmem:[%s6 + $0xc] sm:$0xf]
          %v1340 = vld [vmem:[%s6 + $0x10] sm:$0xf]
          %v1346 = vunpack.c.l.b16 %v1336
          %v1347 = vunpack.c.l.b16 %v1337
          %v1348 = vunpack.c.l.b16 %v1338
          %v1349 = vunpack.c.l.b16 %v1339
          %v1350 = vunpack.c.l.b16 %v1340
          %v1351 = vpack.c.b16 %v1347, %v1346
          %v1352 = vpack.c.b16 %v1349, %v1348
          %v1353 = vpack.c.b16 %v1350, %v1350
          %vm1356 = vcmask 326656
          %v1358 = vsel %vm1356, %v1328, 0
          %v1361 = vsel %vm1356, %v1329, 0
          %v1364 = vsel %vm1356, %v1330, 0
          %v1367 = vsel %vm1356, %v1331, 0
          %v1370 = vsel %vm1356, %v1332, 0
          %v1373 = vsel %vm1356, %v1333, 0
          %v1376 = vsel %vm1356, %v1334, 0
          %v1379 = vsel %vm1356, %v1335, 0
          %v1382 = vsel %vm590, %v1353, 0
          %1384 = vmatprep.subr.bf16.mxu0 0
          %1385 = vmatpush1.bf16.msra.mxu0 0
          %1386 = vmatprep.subr.bf16.mxu0 0
          %1387 = vmatpush1.bf16.msra.mxu0 0
          %1388 = vmatprep.subr.bf16.mxu0 0
          %1389 = vmatpush1.bf16.msra.mxu0 0
          %1390 = vmatprep.subr.bf16.mxu0 0
          %1391 = vmatpush1.bf16.msra.mxu0 0
          %1392 = vmatprep.subr.bf16.mxu0 0
          %1393 = vmatpush1.bf16.msra.mxu0 0
          %1394 = vmatprep.subr.bf16.mxu0 0
          %1395 = vmatpush1.bf16.msra.mxu0 %v1382
          %1396 = vmatprep.subr.bf16.mxu0 0
          %1397 = vmatpush1.bf16.msra.mxu0 %v1352
          %1398 = vmatprep.subr.bf16.mxu0 0
          %1399 = vmatpush1.bf16.msra.mxu0 %v1351
          %1400 = vmatprep.subr.bf16.mxu0 0
          %1401 = vmatpush2.bf16.msra.mxu0 0
          %1402 = vmatprep.subr.bf16.mxu0 0
          %1403 = vmatpush2.bf16.msra.mxu0 0
          %1404 = vmatprep.subr.bf16.mxu0 0
          %1405 = vmatpush2.bf16.msra.mxu0 0
          %1406 = vmatprep.subr.bf16.mxu0 0
          %1407 = vmatpush2.bf16.msra.mxu0 0
          %1408 = vmatprep.subr.bf16.mxu0 0
          %1409 = vmatpush2.bf16.msra.mxu0 0
          %1410 = vmatprep.subr.bf16.mxu0 0
          %1411 = vmatpush2.bf16.msra.mxu0 0
          %1412 = vmatprep.subr.bf16.mxu0 0
          %1413 = vmatpush2.bf16.msra.mxu0 0
          %1414 = vmatprep.subr.bf16.mxu0 0
          %1415 = vmatpush2.bf16.msra.mxu0 0
          %1416 = vmatprep.mubr.bf16.mxu0 0
          %1417 = vmatmul.mubr.bf16.gmra.mxu0 %v1358
          %v1418 = vpop.f32.mrf.mxu0
          %v1419 = vadd.f32 0.0, %v1418
          %v1420 = vpop.f32.mrf.mxu0
          %v1421 = vpop.f32.mrf.mxu0
          %v1422 = vadd.f32 0.0, %v1421
          %v1423 = vpop.f32.mrf.mxu0
          %1424 = vmatprep.mubr.bf16.mxu0 0
          %1425 = vmatmul.mubr.bf16.gmra.mxu0 %v1361
          %v1426 = vpop.f32.mrf.mxu0
          %v1427 = vadd.f32 0.0, %v1426
          %v1428 = vpop.f32.mrf.mxu0
          %v1429 = vpop.f32.mrf.mxu0
          %v1430 = vadd.f32 0.0, %v1429
          %v1431 = vpop.f32.mrf.mxu0
          %1432 = vmatprep.mubr.bf16.mxu0 0
          %1433 = vmatmul.mubr.bf16.gmra.mxu0 %v1364
          %v1434 = vpop.f32.mrf.mxu0
          %v1435 = vadd.f32 0.0, %v1434
          %v1436 = vpop.f32.mrf.mxu0
          %v1437 = vpop.f32.mrf.mxu0
          %v1438 = vadd.f32 0.0, %v1437
          %v1439 = vpop.f32.mrf.mxu0
          %1440 = vmatprep.mubr.bf16.mxu0 0
          %1441 = vmatmul.mubr.bf16.gmra.mxu0 %v1367
          %v1442 = vpop.f32.mrf.mxu0
          %v1443 = vadd.f32 0.0, %v1442
          %v1444 = vpop.f32.mrf.mxu0
          %v1445 = vpop.f32.mrf.mxu0
          %v1446 = vadd.f32 0.0, %v1445
          %v1447 = vpop.f32.mrf.mxu0
          %1448 = vmatprep.mubr.bf16.mxu0 0
          %1449 = vmatmul.mubr.bf16.gmra.mxu0 %v1370
          %v1450 = vpop.f32.mrf.mxu0
          %v1451 = vadd.f32 0.0, %v1450
          %v1452 = vpop.f32.mrf.mxu0
          %v1453 = vpop.f32.mrf.mxu0
          %v1454 = vadd.f32 0.0, %v1453
          %v1455 = vpop.f32.mrf.mxu0
          %1456 = vmatprep.mubr.bf16.mxu0 0
          %1457 = vmatmul.mubr.bf16.gmra.mxu0 %v1373
          %v1458 = vpop.f32.mrf.mxu0
          %v1459 = vadd.f32 0.0, %v1458
          %v1460 = vpop.f32.mrf.mxu0
          %v1461 = vpop.f32.mrf.mxu0
          %v1462 = vadd.f32 0.0, %v1461
          %v1463 = vpop.f32.mrf.mxu0
          %1464 = vmatprep.mubr.bf16.mxu0 0
          %1465 = vmatmul.mubr.bf16.gmra.mxu0 %v1376
          %v1466 = vpop.f32.mrf.mxu0
          %v1467 = vadd.f32 0.0, %v1466
          %v1468 = vpop.f32.mrf.mxu0
          %v1469 = vpop.f32.mrf.mxu0
          %v1470 = vadd.f32 0.0, %v1469
          %v1471 = vpop.f32.mrf.mxu0
          %1472 = vmatprep.mubr.bf16.mxu0 0
          %1473 = vmatmul.mubr.bf16.gmra.mxu0 %v1379
          %v1474 = vpop.f32.mrf.mxu0
          %v1475 = vadd.f32 0.0, %v1474
          %v1476 = vpop.f32.mrf.mxu0
          %v1477 = vpop.f32.mrf.mxu0
          %v1478 = vadd.f32 0.0, %v1477
          %v1479 = vpop.f32.mrf.mxu0
          %1480 = vdwg.mxu0
          %v1481 = vpack.c.bf16 %v1422, %v1419
          %v1482 = vpack.c.bf16 %v1430, %v1427
          %v1483 = vpack.c.bf16 %v1438, %v1435
          %v1484 = vpack.c.bf16 %v1446, %v1443
          %v1485 = vpack.c.bf16 %v1454, %v1451
          %v1486 = vpack.c.bf16 %v1462, %v1459
          %v1487 = vpack.c.bf16 %v1470, %v1467
          %v1488 = vpack.c.bf16 %v1478, %v1475
          %v1497 = vunpack.c.l.b16 %v1481
          %v1498 = vunpack.c.h.b16 %v1481
          %v1499 = vunpack.c.l.b16 %v1482
          %v1500 = vunpack.c.h.b16 %v1482
          %v1501 = vunpack.c.l.b16 %v1483
          %v1502 = vunpack.c.h.b16 %v1483
          %v1503 = vunpack.c.l.b16 %v1484
          %v1504 = vunpack.c.h.b16 %v1484
          %v1505 = vunpack.c.l.b16 %v1485
          %v1506 = vunpack.c.h.b16 %v1485
          %v1507 = vunpack.c.l.b16 %v1486
          %v1508 = vunpack.c.h.b16 %v1486
          %v1509 = vunpack.c.l.b16 %v1487
          %v1510 = vunpack.c.h.b16 %v1487
          %v1511 = vunpack.c.l.b16 %v1488
          %v1512 = vunpack.c.h.b16 %v1488
          %v1513 = vpack.c.b16 %v1497, %v1497
          %v1514 = vpack.c.b16 %v1498, %v1498
          %v1515 = vpack.c.b16 %v1499, %v1499
          %v1516 = vpack.c.b16 %v1500, %v1500
          %v1517 = vpack.c.b16 %v1501, %v1501
          %v1518 = vpack.c.b16 %v1502, %v1502
          %v1519 = vpack.c.b16 %v1503, %v1503
          %v1520 = vpack.c.b16 %v1504, %v1504
          %v1521 = vpack.c.b16 %v1505, %v1505
          %v1522 = vpack.c.b16 %v1506, %v1506
          %v1523 = vpack.c.b16 %v1507, %v1507
          %v1524 = vpack.c.b16 %v1508, %v1508
          %v1525 = vpack.c.b16 %v1509, %v1509
          %v1526 = vpack.c.b16 %v1510, %v1510
          %v1527 = vpack.c.b16 %v1511, %v1511
          %v1528 = vpack.c.b16 %v1512, %v1512
          %vm1545 = vcmask 125952
          %1546 = vst.msk [vmem:[%s484] sm:$0xf] %vm1545, %v1513
          %1547 = vst.msk [vmem:[%s484 + $0x4] sm:$0xf] %vm1545, %v1514
          %1548 = vst.msk [vmem:[%s484 + $0x8] sm:$0xf] %vm1545, %v1515
          %1549 = vst.msk [vmem:[%s484 + $0xc] sm:$0xf] %vm1545, %v1516
          %1550 = vst.msk [vmem:[%s484 + $0x10] sm:$0xf] %vm1545, %v1517
          %1551 = vst.msk [vmem:[%s484 + $0x14] sm:$0xf] %vm1545, %v1518
          %1552 = vst.msk [vmem:[%s484 + $0x18] sm:$0xf] %vm1545, %v1519
          %1553 = vst.msk [vmem:[%s484 + $0x1c] sm:$0xf] %vm1545, %v1520
          %1554 = vst.msk [vmem:[%s484 + $0x20] sm:$0xf] %vm1545, %v1521
          %1555 = vst.msk [vmem:[%s484 + $0x24] sm:$0xf] %vm1545, %v1522
          %1556 = vst.msk [vmem:[%s484 + $0x28] sm:$0xf] %vm1545, %v1523
          %1557 = vst.msk [vmem:[%s484 + $0x2c] sm:$0xf] %vm1545, %v1524
          %1558 = vst.msk [vmem:[%s484 + $0x30] sm:$0xf] %vm1545, %v1525
          %1559 = vst.msk [vmem:[%s484 + $0x34] sm:$0xf] %vm1545, %v1526
          %1560 = vst.msk [vmem:[%s484 + $0x38] sm:$0xf] %vm1545, %v1527
          %1561 = vst.msk [vmem:[%s484 + $0x3c] sm:$0xf] %vm1545, %v1528
        $region97: #{tpu_custom_call.1} parent=84 // pred_fallthru
          _
        %s1562 = smul.u32 16, %s24
        %p1563 = scmp.lt.s32.totalorder %s1562, 31
        %s1564 = scalar_select %p1563, %s1562, 31
        %s1565 = smul.addr %s1564, 8
        %s1566 = scalar_lea.vmem %s7, %s1565
        %s1567 = smul.u32 16, %s24
        %p1568 = scmp.lt.s32.totalorder %s1567, 31
        %s1569 = scalar_select %p1568, %s1567, 31
        %s1570 = smul.addr %s1569, 4
        %s1571 = scalar_lea.vmem %s8, %s1570
        // Predicated region
        $region98: #{tpu_custom_call.1} parent=84 // pred_check
          %p1572 = pneg %p214
        $region99: #{tpu_custom_call.1} parent=84 // pred_check_branch
          %1574 = sbr.rel (%p1572) target = $region101
        $region100: #{tpu_custom_call.1} parent=84 // pred_region
          %s1575 = smul.u32 16, %s24
        $region101: #{tpu_custom_call.1} parent=84 // pred_fallthru
          _
        // Predicated region
        $region102: #{tpu_custom_call.1} parent=84 // pred_check
          %p1576 = pneg %p240
        $region103: #{tpu_custom_call.1} parent=84 // pred_check_branch
          %1578 = sbr.rel (%p1576) target = $region105
        $region104: #{tpu_custom_call.1} parent=84 // pred_region
          %s1579 = smul.u32 16, %s24
        $region105: #{tpu_custom_call.1} parent=84 // pred_fallthru
          _
      $region85: #{tpu_custom_call.1} parent=5 // pred_fallthru
        _
      %p1580 = scmp.le.s32.totalorder 2, %s15
      // Predicated region
      $region106: #{tpu_custom_call.1} parent=5 // pred_check
        %p1581 = pneg %p1580
      $region107: #{tpu_custom_call.1} parent=5 // pred_check_branch
        %1583 = sbr.rel (%p1581) target = $region109
      $region108: #{tpu_custom_call.1} parent=5 // pred_region
        %s1584 = ssub.s32 %s15, 2
        // Predicated region
        $region110: #{tpu_custom_call.1} parent=108 // pred_check
          %p1585 = pneg %p220
        $region111: #{tpu_custom_call.1} parent=108 // pred_check_branch
          %1587 = sbr.rel (%p1585) target = $region113
        $region112: #{tpu_custom_call.1} parent=108 // pred_region
          %s1588 = smul.u32 16, %s26
          %p1589 = scmp.lt.s32.totalorder %s1588, 31
          %s1590 = scalar_select %p1589, %s1588, 31
          %s1591 = smul.addr %s1590, 8
          %s1592 = scalar_lea.vmem %s7, %s1591
        $region113: #{tpu_custom_call.1} parent=108 // pred_fallthru
          _
        // Predicated region
        $region114: #{tpu_custom_call.1} parent=108 // pred_check
          %p1593 = pneg %p246
        $region115: #{tpu_custom_call.1} parent=108 // pred_check_branch
          %1595 = sbr.rel (%p1593) target = $region117
        $region116: #{tpu_custom_call.1} parent=108 // pred_region
          %s1596 = smul.u32 16, %s26
          %p1597 = scmp.lt.s32.totalorder %s1596, 31
          %s1598 = scalar_select %p1597, %s1596, 31
          %s1599 = smul.addr %s1598, 4
          %s1600 = scalar_lea.vmem %s8, %s1599
        $region117: #{tpu_custom_call.1} parent=108 // pred_fallthru
          _
      $region109: #{tpu_custom_call.1} parent=5 // pred_fallthru
        _
    $region6: #{tpu_custom_call.1} parent=1 // loop_footer
      %s19 = sadd.s32 1, %s15
    $region7: #{tpu_custom_call.1} parent=1 // loop_footer_branch
      %14 = sbr.rel target = $region3
    $region8: #{tpu_custom_call.1} parent=1 // loop_exit
      _

</llo_original>
